<compile_context>
chip_gen: v5e
topology: v5e:2x2
jax: 0.10.0
libtpu: 0.0.40
codegen_flags: <defaults>
</compile_context>

<pallas_src>
import functools

import jax
import jax.numpy as jnp
import numpy as np
from jax.experimental import pallas as pl
from jax.experimental.pallas import tpu as pltpu

HIDDEN = 5      # nn.LSTM(hidden_size=5)
FC_OUT = 1      # nn.Linear(5, 1)
H_PAD = 128     # lane quantum: each gate occupies one full 128-lane block
B_PAD = 8       # f32 sublane quantum
OUT_PAD = 128   # lane-padded fc output width (only column 0 is valid)


def _lstm_fc_kernel(x_ref, w_ih_t_ref, w_hh_t_ref, b_ref, fc_w_t_ref, fc_b_ref,
                    o_ref, xproj_ref):
    """LSTM over the whole sequence + last-step ReLU + Linear.

    x_ref      : (T*Bp, F)     time-major, batch-padded, flattened input
    w_ih_t_ref : (F, 4*Hp)     input->gate weights, gate order [i, f, o, g], lane-padded
    w_hh_t_ref : (Hp, 4*Hp)    hidden->gate weights, same layout
    b_ref      : (1, 4*Hp)     bias_ih + bias_hh, same layout
    fc_w_t_ref : (Hp, OUT_PAD) fc1 weight, lane-padded (col 0 valid)
    fc_b_ref   : (1, OUT_PAD)  fc1 bias, lane-padded
    o_ref      : (Bp, OUT_PAD) output (rows [:B], col 0 valid)
    xproj_ref  : (T*Bp, 4*Hp)  VMEM scratch holding the hoisted input projection
    """
    Bp = o_ref.shape[0]
    T = x_ref.shape[0] // Bp
    Hp4 = w_hh_t_ref.shape[1]
    Hp = Hp4 // 4

    # ---- Phase 1: hoisted input projection (+ bias) for ALL timesteps --------
    # One lane-dense (T*Bp, F) x (F, 4*Hp) MXU matmul instead of T tiny ones
    # inside the serial recurrence.
    xproj_ref[...] = (
        jnp.dot(x_ref[...], w_ih_t_ref[...], preferred_element_type=jnp.float32)
        + b_ref[...])

    w_hh_t = w_hh_t_ref[...]

    # ---- Phase 2: recurrence -------------------------------------------------
    # Per step: one MXU push (h @ W_hh), one sigmoid over a contiguous (Bp, 3*Hp)
    # slab, one tanh over (Bp, Hp), plus a few full-vreg VPU ops. All gate
    # slices are lane-aligned (multiples of 128) -> free static vreg views.
    def step(t, carry):
        h, c = carry
        row = pl.multiple_of(t * Bp, Bp)
        gates = xproj_ref[pl.ds(row, Bp), :] + jnp.dot(
            h, w_hh_t, preferred_element_type=jnp.float32)       # (Bp, 4*Hp)
        sig = jax.nn.sigmoid(gates[:, 0:3 * Hp])                  # [i | f | o]
        g_g = jnp.tanh(gates[:, 3 * Hp:4 * Hp])                   # g
        i_g = sig[:, 0:Hp]
        f_g = sig[:, Hp:2 * Hp]
        o_g = sig[:, 2 * Hp:3 * Hp]
        c_new = f_g * c + i_g * g_g
        h_new = o_g * jnp.tanh(c_new)
        return (h_new, c_new)

    h0 = jnp.zeros((Bp, Hp), jnp.float32)
    c0 = jnp.zeros((Bp, Hp), jnp.float32)
    # T is small & static here; full unroll keeps LLO scheduling visibility.
    # TODO(synk): for long T, switch to a partially-unrolled loop / T grid axis
    # with x streamed via BlockSpec double-buffering (v7x VMEM is only 64 MiB).
    h_last, _ = jax.lax.fori_loop(0, T, step, (h0, c0), unroll=True)

    # ---- Phase 3: fc1(relu(h_T)) on lane-padded weights ----------------------
    o_ref[...] = (
        jnp.dot(jnp.maximum(h_last, 0.0), fc_w_t_ref[...],
                preferred_element_type=jnp.float32)
        + fc_b_ref[...]).astype(o_ref.dtype)


def _pack_gate_rows(w, h, h_pad):
    """Reorder PyTorch gate row-blocks [i, f, g, o] -> [i, f, o, g], zero-pad each to h_pad."""
    i_w = w[0 * h:1 * h]
    f_w = w[1 * h:2 * h]
    g_w = w[2 * h:3 * h]
    o_w = w[3 * h:4 * h]
    out = jnp.zeros((4 * h_pad,) + w.shape[1:], w.dtype)
    for k, blk in enumerate((i_w, f_w, o_w, g_w)):
        out = out.at[k * h_pad:k * h_pad + h].set(blk)
    return out


@functools.partial(jax.jit, static_argnames=())
def lstm_forward(x, w_ih, w_hh, b_ih, b_hh, fc_w, fc_b):
    """x: (B, T, F) float32. Returns (B, 1) float32."""
    B, T, F = x.shape
    H, Hp, Bp = HIDDEN, H_PAD, B_PAD

    # Time-major, batch padded to the sublane quantum, flattened to (T*Bp, F).
    x_tm = jnp.zeros((T, Bp, F), jnp.float32).at[:, :B, :].set(
        jnp.transpose(x, (1, 0, 2)))
    x_flat = x_tm.reshape(T * Bp, F)

    # Gate-reordered ([i, f, o, g]) + lane-padded weights. Zero padding keeps the
    # padded hidden/cell lanes exactly zero throughout the recurrence
    # (sigmoid(0)*0 terms), so no masking is needed in the kernel.
    w_ih_t = _pack_gate_rows(w_ih, H, Hp).T                             # (F, 4*Hp)
    w_hh_t = jnp.zeros((Hp, 4 * Hp), jnp.float32).at[:H, :].set(
        _pack_gate_rows(w_hh, H, Hp).T)                                 # (Hp, 4*Hp)
    b = _pack_gate_rows((b_ih + b_hh)[:, None], H, Hp).reshape(1, 4 * Hp)
    fc_w_t = jnp.zeros((Hp, OUT_PAD), jnp.float32).at[:H, :FC_OUT].set(fc_w.T)
    fc_b_p = jnp.zeros((1, OUT_PAD), jnp.float32).at[0, :FC_OUT].set(fc_b)

    vmem = pl.BlockSpec(memory_space=pltpu.MemorySpace.VMEM)
    out = pl.pallas_call(
        _lstm_fc_kernel,
        out_shape=jax.ShapeDtypeStruct((Bp, OUT_PAD), jnp.float32),
        in_specs=[vmem] * 6,
        out_specs=vmem,
        scratch_shapes=[pltpu.VMEM((T * Bp, 4 * Hp), jnp.float32)],
    )(x_flat, w_ih_t, w_hh_t, b, fc_w_t, fc_b_p)
    return out[:B, :FC_OUT]


def reference_forward(x, w_ih, w_hh, b_ih, b_hh, fc_w, fc_b):
    """Pure-JAX reference mirroring torch.nn.LSTM + fc1(relu(.))."""
    B, T, F = x.shape
    H = HIDDEN
    h = jnp.zeros((B, H), jnp.float32)
    c = jnp.zeros((B, H), jnp.float32)
    for t in range(T):
        gates = x[:, t, :] @ w_ih.T + h @ w_hh.T + b_ih + b_hh
        i_g = jax.nn.sigmoid(gates[:, 0 * H:1 * H])
        f_g = jax.nn.sigmoid(gates[:, 1 * H:2 * H])
        g_g = jnp.tanh(gates[:, 2 * H:3 * H])
        o_g = jax.nn.sigmoid(gates[:, 3 * H:4 * H])
        c = f_g * c + i_g * g_g
        h = o_g * jnp.tanh(c)
    return jnp.maximum(h, 0.0) @ fc_w.T + fc_b


def init_params(key, n_features):
    """Deterministic init matching PyTorch parameter shapes (uniform(-k, k), k=1/sqrt(H))."""
    k = 1.0 / np.sqrt(HIDDEN)
    keys = jax.random.split(key, 6)
    w_ih = jax.random.uniform(keys[0], (4 * HIDDEN, n_features), jnp.float32, -k, k)
    w_hh = jax.random.uniform(keys[1], (4 * HIDDEN, HIDDEN), jnp.float32, -k, k)
    b_ih = jax.random.uniform(keys[2], (4 * HIDDEN,), jnp.float32, -k, k)
    b_hh = jax.random.uniform(keys[3], (4 * HIDDEN,), jnp.float32, -k, k)
    fc_w = jax.random.uniform(keys[4], (FC_OUT, HIDDEN), jnp.float32, -k, k)
    fc_b = jax.random.uniform(keys[5], (FC_OUT,), jnp.float32, -k, k)
    return w_ih, w_hh, b_ih, b_hh, fc_w, fc_b


if __name__ == "__main__":
    key = jax.random.PRNGKey(0)
    k_x, k_p = jax.random.split(key)

    batch, seq, n_features = 2, 8, 4
    x = jax.random.normal(k_x, (batch, seq, n_features), jnp.float32)
    params = init_params(k_p, n_features)

    out = lstm_forward(x, *params)
    out = jax.block_until_ready(out)

    ref = reference_forward(x, *params)
    assert out.shape == (batch, FC_OUT), out.shape
    np.testing.assert_allclose(np.asarray(out), np.asarray(ref), rtol=1e-5, atol=1e-5)

    print("KERNEL_OK")
</pallas_src>

<mosaic_0001>
module attributes {stable_mosaic.version = 11 : i64} {
  func.func @_lstm_fc_kernel(%arg0: memref<64x4xf32, #tpu.memory_space<vmem>>, %arg1: memref<4x512xf32, #tpu.memory_space<vmem>>, %arg2: memref<128x512xf32, #tpu.memory_space<vmem>>, %arg3: memref<1x512xf32, #tpu.memory_space<vmem>>, %arg4: memref<128x128xf32, #tpu.memory_space<vmem>>, %arg5: memref<1x128xf32, #tpu.memory_space<vmem>>, %arg6: memref<8x128xf32, #tpu.memory_space<vmem>>, %arg7: memref<64x512xf32, #tpu.memory_space<vmem>>) attributes {dimension_semantics = [], scalar_prefetch = 0 : i64, scratch_operands = 1 : i64, tpu.core_type = #tpu.core_type<tc>} {
    %c0 = arith.constant 0 : index
    %c0_0 = arith.constant 0 : index
    %0 = vector.load %arg0[%c0, %c0_0] : memref<64x4xf32, #tpu.memory_space<vmem>>, vector<64x4xf32>
    %c0_1 = arith.constant 0 : index
    %c0_2 = arith.constant 0 : index
    %1 = vector.load %arg1[%c0_1, %c0_2] : memref<4x512xf32, #tpu.memory_space<vmem>>, vector<4x512xf32>
    %cst = arith.constant dense<0.000000e+00> : vector<64x512xf32>
    %2 = tpu.matmul %0, %1, %cst {dimension_numbers = #tpu.dot_dimension_numbers<[1], [0], [0], [1], [0, 0, 1, 1], [], []>} : vector<64x4xf32>, vector<4x512xf32>, vector<64x512xf32> -> vector<64x512xf32>
    %c0_3 = arith.constant 0 : index
    %c0_4 = arith.constant 0 : index
    %3 = vector.load %arg3[%c0_3, %c0_4] : memref<1x512xf32, #tpu.memory_space<vmem>>, vector<1x512xf32>
    %4 = vector.broadcast %3 : vector<1x512xf32> to vector<64x512xf32>
    %5 = arith.addf %2, %4 : vector<64x512xf32>
    %c0_5 = arith.constant 0 : index
    %c0_6 = arith.constant 0 : index
    %6 = vector.load %arg7[%c0_5, %c0_6] : memref<64x512xf32, #tpu.memory_space<vmem>>, vector<64x512xf32>
    tpu.vector_store %arg7[%c0_5, %c0_6], %5 {strides = array<i32>} : memref<64x512xf32, #tpu.memory_space<vmem>>, vector<64x512xf32>,
    %c0_7 = arith.constant 0 : index
    %c0_8 = arith.constant 0 : index
    %7 = vector.load %arg2[%c0_7, %c0_8] : memref<128x512xf32, #tpu.memory_space<vmem>>, vector<128x512xf32>
    %cst_9 = arith.constant 0.000000e+00 : f32
    %8 = vector.broadcast %cst_9 : f32 to vector<8x128xf32>
    %cst_10 = arith.constant 0.000000e+00 : f32
    %9 = vector.broadcast %cst_10 : f32 to vector<8x128xf32>
    %c0_i32 = arith.constant 0 : i32
    %c8_i32 = arith.constant 8 : i32
    %10 = arith.muli %c0_i32, %c8_i32 : i32
    %11 = tpu.assume_multiple %10, 8 : i32
    %12 = arith.index_cast %11 : i32 to index
    %c0_11 = arith.constant 0 : index
    %13 = vector.load %arg7[%12, %c0_11] : memref<64x512xf32, #tpu.memory_space<vmem>>, vector<8x512xf32>
    %cst_12 = arith.constant dense<0.000000e+00> : vector<8x512xf32>
    %14 = tpu.matmul %8, %7, %cst_12 {dimension_numbers = #tpu.dot_dimension_numbers<[1], [0], [0], [1], [0, 0, 1, 1], [], []>} : vector<8x128xf32>, vector<128x512xf32>, vector<8x512xf32> -> vector<8x512xf32>
    %15 = arith.addf %13, %14 : vector<8x512xf32>
    %16 = vector.extract_strided_slice %15 {offsets = [0, 0], sizes = [8, 384], strides = [1, 1]} : vector<8x512xf32> to vector<8x384xf32>
    %17 = arith.negf %16 : vector<8x384xf32>
    %18 = math.exp %17 : vector<8x384xf32>
    %cst_13 = arith.constant 1.000000e+00 : f32
    %19 = vector.broadcast %cst_13 : f32 to vector<8x384xf32>
    %20 = arith.addf %19, %18 : vector<8x384xf32>
    %21 = arith.divf %19, %20 : vector<8x384xf32>
    %22 = vector.extract_strided_slice %15 {offsets = [0, 384], sizes = [8, 128], strides = [1, 1]} : vector<8x512xf32> to vector<8x128xf32>
    %23 = math.tanh %22 : vector<8x128xf32>
    %24 = vector.extract_strided_slice %21 {offsets = [0, 0], sizes = [8, 128], strides = [1, 1]} : vector<8x384xf32> to vector<8x128xf32>
    %25 = vector.extract_strided_slice %21 {offsets = [0, 128], sizes = [8, 128], strides = [1, 1]} : vector<8x384xf32> to vector<8x128xf32>
    %26 = vector.extract_strided_slice %21 {offsets = [0, 256], sizes = [8, 128], strides = [1, 1]} : vector<8x384xf32> to vector<8x128xf32>
    %27 = arith.mulf %25, %9 : vector<8x128xf32>
    %28 = arith.mulf %24, %23 : vector<8x128xf32>
    %29 = arith.addf %27, %28 : vector<8x128xf32>
    %30 = math.tanh %29 : vector<8x128xf32>
    %31 = arith.mulf %26, %30 : vector<8x128xf32>
    %c1_i32 = arith.constant 1 : i32
    %c8_i32_14 = arith.constant 8 : i32
    %32 = arith.muli %c1_i32, %c8_i32_14 : i32
    %33 = tpu.assume_multiple %32, 8 : i32
    %34 = arith.index_cast %33 : i32 to index
    %c0_15 = arith.constant 0 : index
    %35 = vector.load %arg7[%34, %c0_15] : memref<64x512xf32, #tpu.memory_space<vmem>>, vector<8x512xf32>
    %cst_16 = arith.constant dense<0.000000e+00> : vector<8x512xf32>
    %36 = tpu.matmul %31, %7, %cst_16 {dimension_numbers = #tpu.dot_dimension_numbers<[1], [0], [0], [1], [0, 0, 1, 1], [], []>} : vector<8x128xf32>, vector<128x512xf32>, vector<8x512xf32> -> vector<8x512xf32>
    %37 = arith.addf %35, %36 : vector<8x512xf32>
    %38 = vector.extract_strided_slice %37 {offsets = [0, 0], sizes = [8, 384], strides = [1, 1]} : vector<8x512xf32> to vector<8x384xf32>
    %39 = arith.negf %38 : vector<8x384xf32>
    %40 = math.exp %39 : vector<8x384xf32>
    %cst_17 = arith.constant 1.000000e+00 : f32
    %41 = vector.broadcast %cst_17 : f32 to vector<8x384xf32>
    %42 = arith.addf %41, %40 : vector<8x384xf32>
    %43 = arith.divf %41, %42 : vector<8x384xf32>
    %44 = vector.extract_strided_slice %37 {offsets = [0, 384], sizes = [8, 128], strides = [1, 1]} : vector<8x512xf32> to vector<8x128xf32>
    %45 = math.tanh %44 : vector<8x128xf32>
    %46 = vector.extract_strided_slice %43 {offsets = [0, 0], sizes = [8, 128], strides = [1, 1]} : vector<8x384xf32> to vector<8x128xf32>
    %47 = vector.extract_strided_slice %43 {offsets = [0, 128], sizes = [8, 128], strides = [1, 1]} : vector<8x384xf32> to vector<8x128xf32>
    %48 = vector.extract_strided_slice %43 {offsets = [0, 256], sizes = [8, 128], strides = [1, 1]} : vector<8x384xf32> to vector<8x128xf32>
    %49 = arith.mulf %47, %29 : vector<8x128xf32>
    %50 = arith.mulf %46, %45 : vector<8x128xf32>
    %51 = arith.addf %49, %50 : vector<8x128xf32>
    %52 = math.tanh %51 : vector<8x128xf32>
    %53 = arith.mulf %48, %52 : vector<8x128xf32>
    %c2_i32 = arith.constant 2 : i32
    %c8_i32_18 = arith.constant 8 : i32
    %54 = arith.muli %c2_i32, %c8_i32_18 : i32
    %55 = tpu.assume_multiple %54, 8 : i32
    %56 = arith.index_cast %55 : i32 to index
    %c0_19 = arith.constant 0 : index
    %57 = vector.load %arg7[%56, %c0_19] : memref<64x512xf32, #tpu.memory_space<vmem>>, vector<8x512xf32>
    %cst_20 = arith.constant dense<0.000000e+00> : vector<8x512xf32>
    %58 = tpu.matmul %53, %7, %cst_20 {dimension_numbers = #tpu.dot_dimension_numbers<[1], [0], [0], [1], [0, 0, 1, 1], [], []>} : vector<8x128xf32>, vector<128x512xf32>, vector<8x512xf32> -> vector<8x512xf32>
    %59 = arith.addf %57, %58 : vector<8x512xf32>
    %60 = vector.extract_strided_slice %59 {offsets = [0, 0], sizes = [8, 384], strides = [1, 1]} : vector<8x512xf32> to vector<8x384xf32>
    %61 = arith.negf %60 : vector<8x384xf32>
    %62 = math.exp %61 : vector<8x384xf32>
    %cst_21 = arith.constant 1.000000e+00 : f32
    %63 = vector.broadcast %cst_21 : f32 to vector<8x384xf32>
    %64 = arith.addf %63, %62 : vector<8x384xf32>
    %65 = arith.divf %63, %64 : vector<8x384xf32>
    %66 = vector.extract_strided_slice %59 {offsets = [0, 384], sizes = [8, 128], strides = [1, 1]} : vector<8x512xf32> to vector<8x128xf32>
    %67 = math.tanh %66 : vector<8x128xf32>
    %68 = vector.extract_strided_slice %65 {offsets = [0, 0], sizes = [8, 128], strides = [1, 1]} : vector<8x384xf32> to vector<8x128xf32>
    %69 = vector.extract_strided_slice %65 {offsets = [0, 128], sizes = [8, 128], strides = [1, 1]} : vector<8x384xf32> to vector<8x128xf32>
    %70 = vector.extract_strided_slice %65 {offsets = [0, 256], sizes = [8, 128], strides = [1, 1]} : vector<8x384xf32> to vector<8x128xf32>
    %71 = arith.mulf %69, %51 : vector<8x128xf32>
    %72 = arith.mulf %68, %67 : vector<8x128xf32>
    %73 = arith.addf %71, %72 : vector<8x128xf32>
    %74 = math.tanh %73 : vector<8x128xf32>
    %75 = arith.mulf %70, %74 : vector<8x128xf32>
    %c3_i32 = arith.constant 3 : i32
    %c8_i32_22 = arith.constant 8 : i32
    %76 = arith.muli %c3_i32, %c8_i32_22 : i32
    %77 = tpu.assume_multiple %76, 8 : i32
    %78 = arith.index_cast %77 : i32 to index
    %c0_23 = arith.constant 0 : index
    %79 = vector.load %arg7[%78, %c0_23] : memref<64x512xf32, #tpu.memory_space<vmem>>, vector<8x512xf32>
    %cst_24 = arith.constant dense<0.000000e+00> : vector<8x512xf32>
    %80 = tpu.matmul %75, %7, %cst_24 {dimension_numbers = #tpu.dot_dimension_numbers<[1], [0], [0], [1], [0, 0, 1, 1], [], []>} : vector<8x128xf32>, vector<128x512xf32>, vector<8x512xf32> -> vector<8x512xf32>
    %81 = arith.addf %79, %80 : vector<8x512xf32>
    %82 = vector.extract_strided_slice %81 {offsets = [0, 0], sizes = [8, 384], strides = [1, 1]} : vector<8x512xf32> to vector<8x384xf32>
    %83 = arith.negf %82 : vector<8x384xf32>
    %84 = math.exp %83 : vector<8x384xf32>
    %cst_25 = arith.constant 1.000000e+00 : f32
    %85 = vector.broadcast %cst_25 : f32 to vector<8x384xf32>
    %86 = arith.addf %85, %84 : vector<8x384xf32>
    %87 = arith.divf %85, %86 : vector<8x384xf32>
    %88 = vector.extract_strided_slice %81 {offsets = [0, 384], sizes = [8, 128], strides = [1, 1]} : vector<8x512xf32> to vector<8x128xf32>
    %89 = math.tanh %88 : vector<8x128xf32>
    %90 = vector.extract_strided_slice %87 {offsets = [0, 0], sizes = [8, 128], strides = [1, 1]} : vector<8x384xf32> to vector<8x128xf32>
    %91 = vector.extract_strided_slice %87 {offsets = [0, 128], sizes = [8, 128], strides = [1, 1]} : vector<8x384xf32> to vector<8x128xf32>
    %92 = vector.extract_strided_slice %87 {offsets = [0, 256], sizes = [8, 128], strides = [1, 1]} : vector<8x384xf32> to vector<8x128xf32>
    %93 = arith.mulf %91, %73 : vector<8x128xf32>
    %94 = arith.mulf %90, %89 : vector<8x128xf32>
    %95 = arith.addf %93, %94 : vector<8x128xf32>
    %96 = math.tanh %95 : vector<8x128xf32>
    %97 = arith.mulf %92, %96 : vector<8x128xf32>
    %c4_i32 = arith.constant 4 : i32
    %c8_i32_26 = arith.constant 8 : i32
    %98 = arith.muli %c4_i32, %c8_i32_26 : i32
    %99 = tpu.assume_multiple %98, 8 : i32
    %100 = arith.index_cast %99 : i32 to index
    %c0_27 = arith.constant 0 : index
    %101 = vector.load %arg7[%100, %c0_27] : memref<64x512xf32, #tpu.memory_space<vmem>>, vector<8x512xf32>
    %cst_28 = arith.constant dense<0.000000e+00> : vector<8x512xf32>
    %102 = tpu.matmul %97, %7, %cst_28 {dimension_numbers = #tpu.dot_dimension_numbers<[1], [0], [0], [1], [0, 0, 1, 1], [], []>} : vector<8x128xf32>, vector<128x512xf32>, vector<8x512xf32> -> vector<8x512xf32>
    %103 = arith.addf %101, %102 : vector<8x512xf32>
    %104 = vector.extract_strided_slice %103 {offsets = [0, 0], sizes = [8, 384], strides = [1, 1]} : vector<8x512xf32> to vector<8x384xf32>
    %105 = arith.negf %104 : vector<8x384xf32>
    %106 = math.exp %105 : vector<8x384xf32>
    %cst_29 = arith.constant 1.000000e+00 : f32
    %107 = vector.broadcast %cst_29 : f32 to vector<8x384xf32>
    %108 = arith.addf %107, %106 : vector<8x384xf32>
    %109 = arith.divf %107, %108 : vector<8x384xf32>
    %110 = vector.extract_strided_slice %103 {offsets = [0, 384], sizes = [8, 128], strides = [1, 1]} : vector<8x512xf32> to vector<8x128xf32>
    %111 = math.tanh %110 : vector<8x128xf32>
    %112 = vector.extract_strided_slice %109 {offsets = [0, 0], sizes = [8, 128], strides = [1, 1]} : vector<8x384xf32> to vector<8x128xf32>
    %113 = vector.extract_strided_slice %109 {offsets = [0, 128], sizes = [8, 128], strides = [1, 1]} : vector<8x384xf32> to vector<8x128xf32>
    %114 = vector.extract_strided_slice %109 {offsets = [0, 256], sizes = [8, 128], strides = [1, 1]} : vector<8x384xf32> to vector<8x128xf32>
    %115 = arith.mulf %113, %95 : vector<8x128xf32>
    %116 = arith.mulf %112, %111 : vector<8x128xf32>
    %117 = arith.addf %115, %116 : vector<8x128xf32>
    %118 = math.tanh %117 : vector<8x128xf32>
    %119 = arith.mulf %114, %118 : vector<8x128xf32>
    %c5_i32 = arith.constant 5 : i32
    %c8_i32_30 = arith.constant 8 : i32
    %120 = arith.muli %c5_i32, %c8_i32_30 : i32
    %121 = tpu.assume_multiple %120, 8 : i32
    %122 = arith.index_cast %121 : i32 to index
    %c0_31 = arith.constant 0 : index
    %123 = vector.load %arg7[%122, %c0_31] : memref<64x512xf32, #tpu.memory_space<vmem>>, vector<8x512xf32>
    %cst_32 = arith.constant dense<0.000000e+00> : vector<8x512xf32>
    %124 = tpu.matmul %119, %7, %cst_32 {dimension_numbers = #tpu.dot_dimension_numbers<[1], [0], [0], [1], [0, 0, 1, 1], [], []>} : vector<8x128xf32>, vector<128x512xf32>, vector<8x512xf32> -> vector<8x512xf32>
    %125 = arith.addf %123, %124 : vector<8x512xf32>
    %126 = vector.extract_strided_slice %125 {offsets = [0, 0], sizes = [8, 384], strides = [1, 1]} : vector<8x512xf32> to vector<8x384xf32>
    %127 = arith.negf %126 : vector<8x384xf32>
    %128 = math.exp %127 : vector<8x384xf32>
    %cst_33 = arith.constant 1.000000e+00 : f32
    %129 = vector.broadcast %cst_33 : f32 to vector<8x384xf32>
    %130 = arith.addf %129, %128 : vector<8x384xf32>
    %131 = arith.divf %129, %130 : vector<8x384xf32>
    %132 = vector.extract_strided_slice %125 {offsets = [0, 384], sizes = [8, 128], strides = [1, 1]} : vector<8x512xf32> to vector<8x128xf32>
    %133 = math.tanh %132 : vector<8x128xf32>
    %134 = vector.extract_strided_slice %131 {offsets = [0, 0], sizes = [8, 128], strides = [1, 1]} : vector<8x384xf32> to vector<8x128xf32>
    %135 = vector.extract_strided_slice %131 {offsets = [0, 128], sizes = [8, 128], strides = [1, 1]} : vector<8x384xf32> to vector<8x128xf32>
    %136 = vector.extract_strided_slice %131 {offsets = [0, 256], sizes = [8, 128], strides = [1, 1]} : vector<8x384xf32> to vector<8x128xf32>
    %137 = arith.mulf %135, %117 : vector<8x128xf32>
    %138 = arith.mulf %134, %133 : vector<8x128xf32>
    %139 = arith.addf %137, %138 : vector<8x128xf32>
    %140 = math.tanh %139 : vector<8x128xf32>
    %141 = arith.mulf %136, %140 : vector<8x128xf32>
    %c6_i32 = arith.constant 6 : i32
    %c8_i32_34 = arith.constant 8 : i32
    %142 = arith.muli %c6_i32, %c8_i32_34 : i32
    %143 = tpu.assume_multiple %142, 8 : i32
    %144 = arith.index_cast %143 : i32 to index
    %c0_35 = arith.constant 0 : index
    %145 = vector.load %arg7[%144, %c0_35] : memref<64x512xf32, #tpu.memory_space<vmem>>, vector<8x512xf32>
    %cst_36 = arith.constant dense<0.000000e+00> : vector<8x512xf32>
    %146 = tpu.matmul %141, %7, %cst_36 {dimension_numbers = #tpu.dot_dimension_numbers<[1], [0], [0], [1], [0, 0, 1, 1], [], []>} : vector<8x128xf32>, vector<128x512xf32>, vector<8x512xf32> -> vector<8x512xf32>
    %147 = arith.addf %145, %146 : vector<8x512xf32>
    %148 = vector.extract_strided_slice %147 {offsets = [0, 0], sizes = [8, 384], strides = [1, 1]} : vector<8x512xf32> to vector<8x384xf32>
    %149 = arith.negf %148 : vector<8x384xf32>
    %150 = math.exp %149 : vector<8x384xf32>
    %cst_37 = arith.constant 1.000000e+00 : f32
    %151 = vector.broadcast %cst_37 : f32 to vector<8x384xf32>
    %152 = arith.addf %151, %150 : vector<8x384xf32>
    %153 = arith.divf %151, %152 : vector<8x384xf32>
    %154 = vector.extract_strided_slice %147 {offsets = [0, 384], sizes = [8, 128], strides = [1, 1]} : vector<8x512xf32> to vector<8x128xf32>
    %155 = math.tanh %154 : vector<8x128xf32>
    %156 = vector.extract_strided_slice %153 {offsets = [0, 0], sizes = [8, 128], strides = [1, 1]} : vector<8x384xf32> to vector<8x128xf32>
    %157 = vector.extract_strided_slice %153 {offsets = [0, 128], sizes = [8, 128], strides = [1, 1]} : vector<8x384xf32> to vector<8x128xf32>
    %158 = vector.extract_strided_slice %153 {offsets = [0, 256], sizes = [8, 128], strides = [1, 1]} : vector<8x384xf32> to vector<8x128xf32>
    %159 = arith.mulf %157, %139 : vector<8x128xf32>
    %160 = arith.mulf %156, %155 : vector<8x128xf32>
    %161 = arith.addf %159, %160 : vector<8x128xf32>
    %162 = math.tanh %161 : vector<8x128xf32>
    %163 = arith.mulf %158, %162 : vector<8x128xf32>
    %c7_i32 = arith.constant 7 : i32
    %c8_i32_38 = arith.constant 8 : i32
    %164 = arith.muli %c7_i32, %c8_i32_38 : i32
    %165 = tpu.assume_multiple %164, 8 : i32
    %166 = arith.index_cast %165 : i32 to index
    %c0_39 = arith.constant 0 : index
    %167 = vector.load %arg7[%166, %c0_39] : memref<64x512xf32, #tpu.memory_space<vmem>>, vector<8x512xf32>
    %cst_40 = arith.constant dense<0.000000e+00> : vector<8x512xf32>
    %168 = tpu.matmul %163, %7, %cst_40 {dimension_numbers = #tpu.dot_dimension_numbers<[1], [0], [0], [1], [0, 0, 1, 1], [], []>} : vector<8x128xf32>, vector<128x512xf32>, vector<8x512xf32> -> vector<8x512xf32>
    %169 = arith.addf %167, %168 : vector<8x512xf32>
    %170 = vector.extract_strided_slice %169 {offsets = [0, 0], sizes = [8, 384], strides = [1, 1]} : vector<8x512xf32> to vector<8x384xf32>
    %171 = arith.negf %170 : vector<8x384xf32>
    %172 = math.exp %171 : vector<8x384xf32>
    %cst_41 = arith.constant 1.000000e+00 : f32
    %173 = vector.broadcast %cst_41 : f32 to vector<8x384xf32>
    %174 = arith.addf %173, %172 : vector<8x384xf32>
    %175 = arith.divf %173, %174 : vector<8x384xf32>
    %176 = vector.extract_strided_slice %169 {offsets = [0, 384], sizes = [8, 128], strides = [1, 1]} : vector<8x512xf32> to vector<8x128xf32>
    %177 = math.tanh %176 : vector<8x128xf32>
    %178 = vector.extract_strided_slice %175 {offsets = [0, 0], sizes = [8, 128], strides = [1, 1]} : vector<8x384xf32> to vector<8x128xf32>
    %179 = vector.extract_strided_slice %175 {offsets = [0, 128], sizes = [8, 128], strides = [1, 1]} : vector<8x384xf32> to vector<8x128xf32>
    %180 = vector.extract_strided_slice %175 {offsets = [0, 256], sizes = [8, 128], strides = [1, 1]} : vector<8x384xf32> to vector<8x128xf32>
    %181 = arith.mulf %179, %161 : vector<8x128xf32>
    %182 = arith.mulf %178, %177 : vector<8x128xf32>
    %183 = arith.addf %181, %182 : vector<8x128xf32>
    %184 = math.tanh %183 : vector<8x128xf32>
    %185 = arith.mulf %180, %184 : vector<8x128xf32>
    %c8_i32_42 = arith.constant 8 : i32
    %cst_43 = arith.constant 0.000000e+00 : f32
    %186 = vector.broadcast %cst_43 : f32 to vector<8x128xf32>
    %187 = arith.maximumf %185, %186 : vector<8x128xf32>
    %c0_44 = arith.constant 0 : index
    %c0_45 = arith.constant 0 : index
    %188 = vector.load %arg4[%c0_44, %c0_45] : memref<128x128xf32, #tpu.memory_space<vmem>>, vector<128x128xf32>
    %cst_46 = arith.constant dense<0.000000e+00> : vector<8x128xf32>
    %189 = tpu.matmul %187, %188, %cst_46 {dimension_numbers = #tpu.dot_dimension_numbers<[1], [0], [0], [1], [0, 0, 1, 1], [], []>} : vector<8x128xf32>, vector<128x128xf32>, vector<8x128xf32> -> vector<8x128xf32>
    %c0_47 = arith.constant 0 : index
    %c0_48 = arith.constant 0 : index
    %190 = vector.load %arg5[%c0_47, %c0_48] : memref<1x128xf32, #tpu.memory_space<vmem>>, vector<1x128xf32>
    %191 = vector.broadcast %190 : vector<1x128xf32> to vector<8x128xf32>
    %192 = arith.addf %189, %191 : vector<8x128xf32>
    %c0_49 = arith.constant 0 : index
    %c0_50 = arith.constant 0 : index
    %193 = vector.load %arg6[%c0_49, %c0_50] : memref<8x128xf32, #tpu.memory_space<vmem>>, vector<8x128xf32>
    tpu.vector_store %arg6[%c0_49, %c0_50], %192 {strides = array<i32>} : memref<8x128xf32, #tpu.memory_space<vmem>>, vector<8x128xf32>,
    return
  }
}

</mosaic_0001>

<llo_original>
// kernel: lstm_forward.1
$region0: #{lstm_forward.1}
  #allocation0 [shape = 'u32[]', space=smem, size = 0x4, offset = 0x4, fixed_abs, tag = 'smem constant byte address 0x4 - core index']
  #allocation1 [shape = 'u32[72,128]{1,0:T(1,128)}', space=vmem, size = 0x9000, scoped, tag = 'internal scratch']
  #allocation2 [shape = 'f32[64,512]{1,0:T(8,128)}', space=vmem, size = 0x20000, scoped, tag = 'scratch operand']
  %s0 = inlined_call_operand.vmem [shape: f32[64,4], index: 0, kind: input, shape index: {}]
  %s1 = inlined_call_operand.vmem [shape: f32[4,512], index: 1, kind: input, shape index: {}]
  %s2 = inlined_call_operand.vmem [shape: f32[128,512], index: 2, kind: input, shape index: {}]
  %s3 = inlined_call_operand.vmem [shape: f32[1,512], index: 3, kind: input, shape index: {}]
  %s4 = inlined_call_operand.vmem [shape: f32[128,128], index: 4, kind: input, shape index: {}]
  %s5 = inlined_call_operand.vmem [shape: f32[1,128], index: 5, kind: input, shape index: {}]
  %s6 = inlined_call_operand.vmem [shape: f32[8,128], index: 6, kind: output, shape index: {}]
  %s7 = sld [smem:[#allocation0]]
  $region34: #{lstm_forward.1} parent=0
    _
  %s9 = ssub.s32 1, %s7
  %s10 = scalar_select 0, %s9, %s7
  // Predicated region
  $region2: #{lstm_forward.1} parent=0 // pred_check
    _
  $region3: #{lstm_forward.1} parent=0 // pred_check_branch
    %12 = sbr.rel (0) target = $region5
  $region4: #{lstm_forward.1} parent=0 // pred_region
    _
  $region5: #{lstm_forward.1} parent=0 // pred_fallthru
    _
  // Predicated region
  $region6: #{lstm_forward.1} parent=0 // pred_check
    _
  $region7: #{lstm_forward.1} parent=0 // pred_check_branch
    %14 = sbr.rel (0) target = $region9
  $region8: #{lstm_forward.1} parent=0 // pred_region
    _
  $region9: #{lstm_forward.1} parent=0 // pred_fallthru
    _
  // Predicated region
  $region10: #{lstm_forward.1} parent=0 // pred_check
    _
  $region11: #{lstm_forward.1} parent=0 // pred_check_branch
    %16 = sbr.rel (0) target = $region13
  $region12: #{lstm_forward.1} parent=0 // pred_region
    _
  $region13: #{lstm_forward.1} parent=0 // pred_fallthru
    _
  // Predicated region
  $region14: #{lstm_forward.1} parent=0 // pred_check
    _
  $region15: #{lstm_forward.1} parent=0 // pred_check_branch
    %18 = sbr.rel (0) target = $region17
  $region16: #{lstm_forward.1} parent=0 // pred_region
    _
  $region17: #{lstm_forward.1} parent=0 // pred_fallthru
    _
  // Predicated region
  $region18: #{lstm_forward.1} parent=0 // pred_check
    _
  $region19: #{lstm_forward.1} parent=0 // pred_check_branch
    %20 = sbr.rel (0) target = $region21
  $region20: #{lstm_forward.1} parent=0 // pred_region
    _
  $region21: #{lstm_forward.1} parent=0 // pred_fallthru
    _
  // Predicated region
  $region22: #{lstm_forward.1} parent=0 // pred_check
    _
  $region23: #{lstm_forward.1} parent=0 // pred_check_branch
    %22 = sbr.rel (0) target = $region25
  $region24: #{lstm_forward.1} parent=0 // pred_region
    _
  $region25: #{lstm_forward.1} parent=0 // pred_fallthru
    _
  %v23 = vld [vmem:[%s0] sm:$0xff]
  %v24 = vld [vmem:[%s0 + $0x8] sm:$0xff]
  %v25 = vld [vmem:[%s0 + $0x10] sm:$0xff]
  %v26 = vld [vmem:[%s0 + $0x18] sm:$0xff]
  %v27 = vld [vmem:[%s0 + $0x20] sm:$0xff]
  %v28 = vld [vmem:[%s0 + $0x28] sm:$0xff]
  %v29 = vld [vmem:[%s0 + $0x30] sm:$0xff]
  %v30 = vld [vmem:[%s0 + $0x38] sm:$0xff]
  %v31 = vld [vmem:[%s1] sm:$0xff]
  %v32 = vld [vmem:[%s1 + $0x8] sm:$0xff]
  %v33 = vld [vmem:[%s3] sm:$0xf]
  %v35 = vperm.slane %v33, 0
  %v36 = vperm.slane %v33, 1
  %v37 = vperm.slane %v33, 2
  %v38 = vperm.slane %v33, 3
  %45 = vst [vmem:[#allocation1] ss:$2 sm:$0xff] %v31
  %s46 = scalar_lea.vmem [#allocation1], 16
  %47 = vst [vmem:[%s46] ss:$2 sm:$0xff] %v32
  %v48 = vld.sshfl [vmem:[#allocation1] sm:$0xff pattern:$0x75316420]
  %v49 = vld.sshfl [vmem:[#allocation1 + $0x8] sm:$0xff pattern:$0x75316420]
  %v50 = vld.sshfl [vmem:[#allocation1 + $0x10] sm:$0xff pattern:$0x75316420]
  %v51 = vld.sshfl [vmem:[#allocation1 + $0x18] sm:$0xff pattern:$0x75316420]
  %vm52 = vcmask 31744
  %v54 = vsel %vm52, %v23, 0
  %v57 = vsel %vm52, %v24, 0
  %v60 = vsel %vm52, %v25, 0
  %v63 = vsel %vm52, %v26, 0
  %v66 = vsel %vm52, %v27, 0
  %v69 = vsel %vm52, %v28, 0
  %v72 = vsel %vm52, %v29, 0
  %v75 = vsel %vm52, %v30, 0
  %vm77 = vcmask 1043456
  %v78 = vsel %vm77, %v48, 0
  %v80 = vsel %vm77, %v49, 0
  %v82 = vsel %vm77, %v50, 0
  %v84 = vsel %vm77, %v51, 0
  %86 = vmatpush.msra.mxu0 0.0
  %87 = vmatpush.msra.mxu0 0.0
  %88 = vmatpush.msra.mxu0 0.0
  %89 = vmatpush.msra.mxu0 0.0
  %90 = vmatpush.msra.mxu0 0.0
  %91 = vmatpush.msra.mxu0 0.0
  %92 = vmatpush.msra.mxu0 0.0
  %93 = vmatpush.msra.mxu0 0.0
  %94 = vmatpush.msra.mxu0 0.0
  %95 = vmatpush.msra.mxu0 0.0
  %96 = vmatpush.msra.mxu0 0.0
  %97 = vmatpush.msra.mxu0 0.0
  %98 = vmatpush.msra.mxu0 0.0
  %99 = vmatpush.msra.mxu0 0.0
  %100 = vmatpush.msra.mxu0 0.0
  %101 = vmatpush.msra.mxu0 %v78
  %102 = vmatmul.f32.gmra.mxu0 %v54
  %v103 = vpop.f32.mrf.mxu0
  %v104 = vadd.f32 %v35, %v103
  %105 = vmatmul.f32.gmra.mxu0 %v57
  %v106 = vpop.f32.mrf.mxu0
  %v107 = vadd.f32 %v35, %v106
  %108 = vmatmul.f32.gmra.mxu0 %v60
  %v109 = vpop.f32.mrf.mxu0
  %v110 = vadd.f32 %v35, %v109
  %111 = vmatmul.f32.gmra.mxu0 %v63
  %v112 = vpop.f32.mrf.mxu0
  %v113 = vadd.f32 %v35, %v112
  %114 = vmatmul.f32.gmra.mxu0 %v66
  %v115 = vpop.f32.mrf.mxu0
  %v116 = vadd.f32 %v35, %v115
  %117 = vmatmul.f32.gmra.mxu0 %v69
  %v118 = vpop.f32.mrf.mxu0
  %v119 = vadd.f32 %v35, %v118
  %120 = vmatmul.f32.gmra.mxu0 %v72
  %v121 = vpop.f32.mrf.mxu0
  %v122 = vadd.f32 %v35, %v121
  %123 = vmatmul.f32.gmra.mxu0 %v75
  %v124 = vpop.f32.mrf.mxu0
  %v125 = vadd.f32 %v35, %v124
  %126 = vdwg.mxu0
  %127 = vmatpush.msra.mxu0 0.0
  %128 = vmatpush.msra.mxu0 0.0
  %129 = vmatpush.msra.mxu0 0.0
  %130 = vmatpush.msra.mxu0 0.0
  %131 = vmatpush.msra.mxu0 0.0
  %132 = vmatpush.msra.mxu0 0.0
  %133 = vmatpush.msra.mxu0 0.0
  %134 = vmatpush.msra.mxu0 0.0
  %135 = vmatpush.msra.mxu0 0.0
  %136 = vmatpush.msra.mxu0 0.0
  %137 = vmatpush.msra.mxu0 0.0
  %138 = vmatpush.msra.mxu0 0.0
  %139 = vmatpush.msra.mxu0 0.0
  %140 = vmatpush.msra.mxu0 0.0
  %141 = vmatpush.msra.mxu0 0.0
  %142 = vmatpush.msra.mxu0 %v80
  %143 = vmatmul.f32.gmra.mxu0 %v54
  %v144 = vpop.f32.mrf.mxu0
  %v145 = vadd.f32 %v36, %v144
  %146 = vmatmul.f32.gmra.mxu0 %v57
  %v147 = vpop.f32.mrf.mxu0
  %v148 = vadd.f32 %v36, %v147
  %149 = vmatmul.f32.gmra.mxu0 %v60
  %v150 = vpop.f32.mrf.mxu0
  %v151 = vadd.f32 %v36, %v150
  %152 = vmatmul.f32.gmra.mxu0 %v63
  %v153 = vpop.f32.mrf.mxu0
  %v154 = vadd.f32 %v36, %v153
  %155 = vmatmul.f32.gmra.mxu0 %v66
  %v156 = vpop.f32.mrf.mxu0
  %v157 = vadd.f32 %v36, %v156
  %158 = vmatmul.f32.gmra.mxu0 %v69
  %v159 = vpop.f32.mrf.mxu0
  %v160 = vadd.f32 %v36, %v159
  %161 = vmatmul.f32.gmra.mxu0 %v72
  %v162 = vpop.f32.mrf.mxu0
  %v163 = vadd.f32 %v36, %v162
  %164 = vmatmul.f32.gmra.mxu0 %v75
  %v165 = vpop.f32.mrf.mxu0
  %v166 = vadd.f32 %v36, %v165
  %167 = vdwg.mxu0
  %168 = vmatpush.msra.mxu0 0.0
  %169 = vmatpush.msra.mxu0 0.0
  %170 = vmatpush.msra.mxu0 0.0
  %171 = vmatpush.msra.mxu0 0.0
  %172 = vmatpush.msra.mxu0 0.0
  %173 = vmatpush.msra.mxu0 0.0
  %174 = vmatpush.msra.mxu0 0.0
  %175 = vmatpush.msra.mxu0 0.0
  %176 = vmatpush.msra.mxu0 0.0
  %177 = vmatpush.msra.mxu0 0.0
  %178 = vmatpush.msra.mxu0 0.0
  %179 = vmatpush.msra.mxu0 0.0
  %180 = vmatpush.msra.mxu0 0.0
  %181 = vmatpush.msra.mxu0 0.0
  %182 = vmatpush.msra.mxu0 0.0
  %183 = vmatpush.msra.mxu0 %v82
  %184 = vmatmul.f32.gmra.mxu0 %v54
  %v185 = vpop.f32.mrf.mxu0
  %v186 = vadd.f32 %v37, %v185
  %187 = vmatmul.f32.gmra.mxu0 %v57
  %v188 = vpop.f32.mrf.mxu0
  %v189 = vadd.f32 %v37, %v188
  %190 = vmatmul.f32.gmra.mxu0 %v60
  %v191 = vpop.f32.mrf.mxu0
  %v192 = vadd.f32 %v37, %v191
  %193 = vmatmul.f32.gmra.mxu0 %v63
  %v194 = vpop.f32.mrf.mxu0
  %v195 = vadd.f32 %v37, %v194
  %196 = vmatmul.f32.gmra.mxu0 %v66
  %v197 = vpop.f32.mrf.mxu0
  %v198 = vadd.f32 %v37, %v197
  %199 = vmatmul.f32.gmra.mxu0 %v69
  %v200 = vpop.f32.mrf.mxu0
  %v201 = vadd.f32 %v37, %v200
  %202 = vmatmul.f32.gmra.mxu0 %v72
  %v203 = vpop.f32.mrf.mxu0
  %v204 = vadd.f32 %v37, %v203
  %205 = vmatmul.f32.gmra.mxu0 %v75
  %v206 = vpop.f32.mrf.mxu0
  %v207 = vadd.f32 %v37, %v206
  %208 = vdwg.mxu0
  %209 = vmatpush.msra.mxu0 0.0
  %210 = vmatpush.msra.mxu0 0.0
  %211 = vmatpush.msra.mxu0 0.0
  %212 = vmatpush.msra.mxu0 0.0
  %213 = vmatpush.msra.mxu0 0.0
  %214 = vmatpush.msra.mxu0 0.0
  %215 = vmatpush.msra.mxu0 0.0
  %216 = vmatpush.msra.mxu0 0.0
  %217 = vmatpush.msra.mxu0 0.0
  %218 = vmatpush.msra.mxu0 0.0
  %219 = vmatpush.msra.mxu0 0.0
  %220 = vmatpush.msra.mxu0 0.0
  %221 = vmatpush.msra.mxu0 0.0
  %222 = vmatpush.msra.mxu0 0.0
  %223 = vmatpush.msra.mxu0 0.0
  %224 = vmatpush.msra.mxu0 %v84
  %225 = vmatmul.f32.gmra.mxu0 %v54
  %v226 = vpop.f32.mrf.mxu0
  %v227 = vadd.f32 %v38, %v226
  %228 = vmatmul.f32.gmra.mxu0 %v57
  %v229 = vpop.f32.mrf.mxu0
  %v230 = vadd.f32 %v38, %v229
  %231 = vmatmul.f32.gmra.mxu0 %v60
  %v232 = vpop.f32.mrf.mxu0
  %v233 = vadd.f32 %v38, %v232
  %234 = vmatmul.f32.gmra.mxu0 %v63
  %v235 = vpop.f32.mrf.mxu0
  %v236 = vadd.f32 %v38, %v235
  %237 = vmatmul.f32.gmra.mxu0 %v66
  %v238 = vpop.f32.mrf.mxu0
  %v239 = vadd.f32 %v38, %v238
  %240 = vmatmul.f32.gmra.mxu0 %v69
  %v241 = vpop.f32.mrf.mxu0
  %v242 = vadd.f32 %v38, %v241
  %243 = vmatmul.f32.gmra.mxu0 %v72
  %v244 = vpop.f32.mrf.mxu0
  %v245 = vadd.f32 %v38, %v244
  %246 = vmatmul.f32.gmra.mxu0 %v75
  %v247 = vpop.f32.mrf.mxu0
  %v248 = vadd.f32 %v38, %v247
  %249 = vdwg.mxu0
  %250 = vst [vmem:[#allocation2] sm:$0xff] %v104
  %251 = vst [vmem:[#allocation2 + $0x8] sm:$0xff] %v145
  %252 = vst [vmem:[#allocation2 + $0x10] sm:$0xff] %v186
  %253 = vst [vmem:[#allocation2 + $0x18] sm:$0xff] %v227
  %254 = vst [vmem:[#allocation2 + $0x20] sm:$0xff] %v107
  %255 = vst [vmem:[#allocation2 + $0x28] sm:$0xff] %v148
  %256 = vst [vmem:[#allocation2 + $0x30] sm:$0xff] %v189
  %257 = vst [vmem:[#allocation2 + $0x38] sm:$0xff] %v230
  %258 = vst [vmem:[#allocation2 + $0x40] sm:$0xff] %v110
  %259 = vst [vmem:[#allocation2 + $0x48] sm:$0xff] %v151
  %260 = vst [vmem:[#allocation2 + $0x50] sm:$0xff] %v192
  %261 = vst [vmem:[#allocation2 + $0x58] sm:$0xff] %v233
  %262 = vst [vmem:[#allocation2 + $0x60] sm:$0xff] %v113
  %263 = vst [vmem:[#allocation2 + $0x68] sm:$0xff] %v154
  %264 = vst [vmem:[#allocation2 + $0x70] sm:$0xff] %v195
  %265 = vst [vmem:[#allocation2 + $0x78] sm:$0xff] %v236
  %266 = vst [vmem:[#allocation2 + $0x80] sm:$0xff] %v116
  %267 = vst [vmem:[#allocation2 + $0x88] sm:$0xff] %v157
  %268 = vst [vmem:[#allocation2 + $0x90] sm:$0xff] %v198
  %269 = vst [vmem:[#allocation2 + $0x98] sm:$0xff] %v239
  %270 = vst [vmem:[#allocation2 + $0xa0] sm:$0xff] %v119
  %271 = vst [vmem:[#allocation2 + $0xa8] sm:$0xff] %v160
  %272 = vst [vmem:[#allocation2 + $0xb0] sm:$0xff] %v201
  %273 = vst [vmem:[#allocation2 + $0xb8] sm:$0xff] %v242
  %274 = vst [vmem:[#allocation2 + $0xc0] sm:$0xff] %v122
  %275 = vst [vmem:[#allocation2 + $0xc8] sm:$0xff] %v163
  %276 = vst [vmem:[#allocation2 + $0xd0] sm:$0xff] %v204
  %277 = vst [vmem:[#allocation2 + $0xd8] sm:$0xff] %v245
  %278 = vst [vmem:[#allocation2 + $0xe0] sm:$0xff] %v125
  %279 = vst [vmem:[#allocation2 + $0xe8] sm:$0xff] %v166
  %280 = vst [vmem:[#allocation2 + $0xf0] sm:$0xff] %v207
  %281 = vst [vmem:[#allocation2 + $0xf8] sm:$0xff] %v248
  %v282 = vld [vmem:[%s2] sm:$0xff]
  %v283 = vld [vmem:[%s2 + $0x8] sm:$0xff]
  %v284 = vld [vmem:[%s2 + $0x10] sm:$0xff]
  %v285 = vld [vmem:[%s2 + $0x18] sm:$0xff]
  %v286 = vld [vmem:[%s2 + $0x20] sm:$0xff]
  %v287 = vld [vmem:[%s2 + $0x28] sm:$0xff]
  %v288 = vld [vmem:[%s2 + $0x30] sm:$0xff]
  %v289 = vld [vmem:[%s2 + $0x38] sm:$0xff]
  %v290 = vld [vmem:[%s2 + $0x40] sm:$0xff]
  %v291 = vld [vmem:[%s2 + $0x48] sm:$0xff]
  %v292 = vld [vmem:[%s2 + $0x50] sm:$0xff]
  %v293 = vld [vmem:[%s2 + $0x58] sm:$0xff]
  %v294 = vld [vmem:[%s2 + $0x60] sm:$0xff]
  %v295 = vld [vmem:[%s2 + $0x68] sm:$0xff]
  %v296 = vld [vmem:[%s2 + $0x70] sm:$0xff]
  %v297 = vld [vmem:[%s2 + $0x78] sm:$0xff]
  %v298 = vld [vmem:[%s2 + $0x80] sm:$0xff]
  %v299 = vld [vmem:[%s2 + $0x88] sm:$0xff]
  %v300 = vld [vmem:[%s2 + $0x90] sm:$0xff]
  %v301 = vld [vmem:[%s2 + $0x98] sm:$0xff]
  %v302 = vld [vmem:[%s2 + $0xa0] sm:$0xff]
  %v303 = vld [vmem:[%s2 + $0xa8] sm:$0xff]
  %v304 = vld [vmem:[%s2 + $0xb0] sm:$0xff]
  %v305 = vld [vmem:[%s2 + $0xb8] sm:$0xff]
  %v306 = vld [vmem:[%s2 + $0xc0] sm:$0xff]
  %v307 = vld [vmem:[%s2 + $0xc8] sm:$0xff]
  %v308 = vld [vmem:[%s2 + $0xd0] sm:$0xff]
  %v309 = vld [vmem:[%s2 + $0xd8] sm:$0xff]
  %v310 = vld [vmem:[%s2 + $0xe0] sm:$0xff]
  %v311 = vld [vmem:[%s2 + $0xe8] sm:$0xff]
  %v312 = vld [vmem:[%s2 + $0xf0] sm:$0xff]
  %v313 = vld [vmem:[%s2 + $0xf8] sm:$0xff]
  %v314 = vld [vmem:[%s2 + $0x100] sm:$0xff]
  %v315 = vld [vmem:[%s2 + $0x108] sm:$0xff]
  %v316 = vld [vmem:[%s2 + $0x110] sm:$0xff]
  %v317 = vld [vmem:[%s2 + $0x118] sm:$0xff]
  %v318 = vld [vmem:[%s2 + $0x120] sm:$0xff]
  %v319 = vld [vmem:[%s2 + $0x128] sm:$0xff]
  %v320 = vld [vmem:[%s2 + $0x130] sm:$0xff]
  %v321 = vld [vmem:[%s2 + $0x138] sm:$0xff]
  %v322 = vld [vmem:[%s2 + $0x140] sm:$0xff]
  %v323 = vld [vmem:[%s2 + $0x148] sm:$0xff]
  %v324 = vld [vmem:[%s2 + $0x150] sm:$0xff]
  %v325 = vld [vmem:[%s2 + $0x158] sm:$0xff]
  %v326 = vld [vmem:[%s2 + $0x160] sm:$0xff]
  %v327 = vld [vmem:[%s2 + $0x168] sm:$0xff]
  %v328 = vld [vmem:[%s2 + $0x170] sm:$0xff]
  %v329 = vld [vmem:[%s2 + $0x178] sm:$0xff]
  %v330 = vld [vmem:[%s2 + $0x180] sm:$0xff]
  %v331 = vld [vmem:[%s2 + $0x188] sm:$0xff]
  %v332 = vld [vmem:[%s2 + $0x190] sm:$0xff]
  %v333 = vld [vmem:[%s2 + $0x198] sm:$0xff]
  %v334 = vld [vmem:[%s2 + $0x1a0] sm:$0xff]
  %v335 = vld [vmem:[%s2 + $0x1a8] sm:$0xff]
  %v336 = vld [vmem:[%s2 + $0x1b0] sm:$0xff]
  %v337 = vld [vmem:[%s2 + $0x1b8] sm:$0xff]
  %v338 = vld [vmem:[%s2 + $0x1c0] sm:$0xff]
  %v339 = vld [vmem:[%s2 + $0x1c8] sm:$0xff]
  %v340 = vld [vmem:[%s2 + $0x1d0] sm:$0xff]
  %v341 = vld [vmem:[%s2 + $0x1d8] sm:$0xff]
  %v342 = vld [vmem:[%s2 + $0x1e0] sm:$0xff]
  %v343 = vld [vmem:[%s2 + $0x1e8] sm:$0xff]
  %v344 = vld [vmem:[%s2 + $0x1f0] sm:$0xff]
  %v345 = vld [vmem:[%s2 + $0x1f8] sm:$0xff]
  %s346 = smul.u32 0, 4
  %s347 = smul.addr %s346, 8
  %s348 = scalar_lea.vmem [#allocation2], %s347
  %v349 = vld [vmem:[%s348] sm:$0xff]
  %v350 = vld [vmem:[%s348 + $0x8] sm:$0xff]
  %v351 = vld [vmem:[%s348 + $0x10] sm:$0xff]
  %v352 = vld [vmem:[%s348 + $0x18] sm:$0xff]
  %353 = vmatpush.msra.mxu0 %v342
  %354 = vmatpush.msra.mxu0 %v338
  %355 = vmatpush.msra.mxu0 %v334
  %356 = vmatpush.msra.mxu0 %v330
  %357 = vmatpush.msra.mxu0 %v326
  %358 = vmatpush.msra.mxu0 %v322
  %359 = vmatpush.msra.mxu0 %v318
  %360 = vmatpush.msra.mxu0 %v314
  %361 = vmatpush.msra.mxu0 %v310
  %362 = vmatpush.msra.mxu0 %v306
  %363 = vmatpush.msra.mxu0 %v302
  %364 = vmatpush.msra.mxu0 %v298
  %365 = vmatpush.msra.mxu0 %v294
  %366 = vmatpush.msra.mxu0 %v290
  %367 = vmatpush.msra.mxu0 %v286
  %368 = vmatpush.msra.mxu0 %v282
  %369 = vmatmul.f32.gmra.mxu0 0.0
  %v370 = vpop.f32.mrf.mxu0
  %v371 = vadd.f32 0.0, %v370
  %372 = vdwg.mxu0
  %373 = vmatpush.msra.mxu0 %v343
  %374 = vmatpush.msra.mxu0 %v339
  %375 = vmatpush.msra.mxu0 %v335
  %376 = vmatpush.msra.mxu0 %v331
  %377 = vmatpush.msra.mxu0 %v327
  %378 = vmatpush.msra.mxu0 %v323
  %379 = vmatpush.msra.mxu0 %v319
  %380 = vmatpush.msra.mxu0 %v315
  %381 = vmatpush.msra.mxu0 %v311
  %382 = vmatpush.msra.mxu0 %v307
  %383 = vmatpush.msra.mxu0 %v303
  %384 = vmatpush.msra.mxu0 %v299
  %385 = vmatpush.msra.mxu0 %v295
  %386 = vmatpush.msra.mxu0 %v291
  %387 = vmatpush.msra.mxu0 %v287
  %388 = vmatpush.msra.mxu0 %v283
  %389 = vmatmul.f32.gmra.mxu0 0.0
  %v390 = vpop.f32.mrf.mxu0
  %v391 = vadd.f32 0.0, %v390
  %392 = vdwg.mxu0
  %393 = vmatpush.msra.mxu0 %v344
  %394 = vmatpush.msra.mxu0 %v340
  %395 = vmatpush.msra.mxu0 %v336
  %396 = vmatpush.msra.mxu0 %v332
  %397 = vmatpush.msra.mxu0 %v328
  %398 = vmatpush.msra.mxu0 %v324
  %399 = vmatpush.msra.mxu0 %v320
  %400 = vmatpush.msra.mxu0 %v316
  %401 = vmatpush.msra.mxu0 %v312
  %402 = vmatpush.msra.mxu0 %v308
  %403 = vmatpush.msra.mxu0 %v304
  %404 = vmatpush.msra.mxu0 %v300
  %405 = vmatpush.msra.mxu0 %v296
  %406 = vmatpush.msra.mxu0 %v292
  %407 = vmatpush.msra.mxu0 %v288
  %408 = vmatpush.msra.mxu0 %v284
  %409 = vmatmul.f32.gmra.mxu0 0.0
  %v410 = vpop.f32.mrf.mxu0
  %v411 = vadd.f32 0.0, %v410
  %412 = vdwg.mxu0
  %413 = vmatpush.msra.mxu0 %v345
  %414 = vmatpush.msra.mxu0 %v341
  %415 = vmatpush.msra.mxu0 %v337
  %416 = vmatpush.msra.mxu0 %v333
  %417 = vmatpush.msra.mxu0 %v329
  %418 = vmatpush.msra.mxu0 %v325
  %419 = vmatpush.msra.mxu0 %v321
  %420 = vmatpush.msra.mxu0 %v317
  %421 = vmatpush.msra.mxu0 %v313
  %422 = vmatpush.msra.mxu0 %v309
  %423 = vmatpush.msra.mxu0 %v305
  %424 = vmatpush.msra.mxu0 %v301
  %425 = vmatpush.msra.mxu0 %v297
  %426 = vmatpush.msra.mxu0 %v293
  %427 = vmatpush.msra.mxu0 %v289
  %428 = vmatpush.msra.mxu0 %v285
  %429 = vmatmul.f32.gmra.mxu0 0.0
  %v430 = vpop.f32.mrf.mxu0
  %v431 = vadd.f32 0.0, %v430
  %432 = vdwg.mxu0
  %v433 = vadd.f32 %v349, %v371
  %v434 = vadd.f32 %v350, %v391
  %v435 = vadd.f32 %v351, %v411
  %v436 = vadd.f32 %v352, %v431
  %v437 = vxor.u32 %v433, 2147483648
  %v438 = vxor.u32 %v434, 2147483648
  %v439 = vxor.u32 %v435, 2147483648
  %v440 = vmul.f32 %v437, 1.442695
  %v441 = vpow.pop %v440
  %v442 = vmul.f32 %v438, 1.442695
  %v443 = vpow.pop %v442
  %v444 = vmul.f32 %v439, 1.442695
  %v445 = vpow.pop %v444
  %v446 = vadd.f32 %v441, 1.0
  %v447 = vadd.f32 %v443, 1.0
  %v448 = vadd.f32 %v445, 1.0
  %v449 = vrcp.pop %v446
  %v450 = vmul.f32 %v446, %v449
  %v451 = vsub.f32 1.0, %v450
  %v452 = vmul.f32 %v449, %v451
  %v453 = vadd.f32 %v449, %v452
  %vm454 = vweird.f32 %v446
  %vm455 = vweird.f32 %v449
  %vm456 = vmor %vm454, %vm455
  %v457 = vsel %vm456, %v449, %v453
  %v458 = vand.u32 2147483647, %v446
  %vm459 = vcmp.eq.f32.partialorder %v458, 8.507059e+37
  %v460 = vand.u32 %v446, 2147483648
  %v461 = vor.u32 1.1754944e-38, %v460
  %v462 = vsel %vm459, %v461, %v457
  %v463 = vmul.f32 1.0, %v462
  %v464 = vrcp.pop %v447
  %v465 = vmul.f32 %v447, %v464
  %v466 = vsub.f32 1.0, %v465
  %v467 = vmul.f32 %v464, %v466
  %v468 = vadd.f32 %v464, %v467
  %vm469 = vweird.f32 %v447
  %vm470 = vweird.f32 %v464
  %vm471 = vmor %vm469, %vm470
  %v472 = vsel %vm471, %v464, %v468
  %v473 = vand.u32 2147483647, %v447
  %vm474 = vcmp.eq.f32.partialorder %v473, 8.507059e+37
  %v475 = vand.u32 %v447, 2147483648
  %v476 = vor.u32 1.1754944e-38, %v475
  %v477 = vsel %vm474, %v476, %v472
  %v478 = vmul.f32 1.0, %v477
  %v479 = vrcp.pop %v448
  %v480 = vmul.f32 %v448, %v479
  %v481 = vsub.f32 1.0, %v480
  %v482 = vmul.f32 %v479, %v481
  %v483 = vadd.f32 %v479, %v482
  %vm484 = vweird.f32 %v448
  %vm485 = vweird.f32 %v479
  %vm486 = vmor %vm484, %vm485
  %v487 = vsel %vm486, %v479, %v483
  %v488 = vand.u32 2147483647, %v448
  %vm489 = vcmp.eq.f32.partialorder %v488, 8.507059e+37
  %v490 = vand.u32 %v448, 2147483648
  %v491 = vor.u32 1.1754944e-38, %v490
  %v492 = vsel %vm489, %v491, %v487
  %v493 = vmul.f32 1.0, %v492
  %v494 = vtanh.pop %v436
  %v495 = vmul.f32 %v478, 0.0
  %v496 = vmul.f32 %v463, %v494
  %v497 = vadd.f32 %v495, %v496
  %v498 = vtanh.pop %v497
  %v499 = vmul.f32 %v493, %v498
  %s500 = smul.u32 1, 4
  %s501 = smul.addr %s500, 8
  %s502 = scalar_lea.vmem [#allocation2], %s501
  %v503 = vld [vmem:[%s502] sm:$0xff]
  %v504 = vld [vmem:[%s502 + $0x8] sm:$0xff]
  %v505 = vld [vmem:[%s502 + $0x10] sm:$0xff]
  %v506 = vld [vmem:[%s502 + $0x18] sm:$0xff]
  %507 = vmatpush.msra.mxu0 %v342
  %508 = vmatpush.msra.mxu0 %v338
  %509 = vmatpush.msra.mxu0 %v334
  %510 = vmatpush.msra.mxu0 %v330
  %511 = vmatpush.msra.mxu0 %v326
  %512 = vmatpush.msra.mxu0 %v322
  %513 = vmatpush.msra.mxu0 %v318
  %514 = vmatpush.msra.mxu0 %v314
  %515 = vmatpush.msra.mxu0 %v310
  %516 = vmatpush.msra.mxu0 %v306
  %517 = vmatpush.msra.mxu0 %v302
  %518 = vmatpush.msra.mxu0 %v298
  %519 = vmatpush.msra.mxu0 %v294
  %520 = vmatpush.msra.mxu0 %v290
  %521 = vmatpush.msra.mxu0 %v286
  %522 = vmatpush.msra.mxu0 %v282
  %523 = vmatmul.f32.gmra.mxu0 %v499
  %v524 = vpop.f32.mrf.mxu0
  %v525 = vadd.f32 0.0, %v524
  %526 = vdwg.mxu0
  %527 = vmatpush.msra.mxu0 %v343
  %528 = vmatpush.msra.mxu0 %v339
  %529 = vmatpush.msra.mxu0 %v335
  %530 = vmatpush.msra.mxu0 %v331
  %531 = vmatpush.msra.mxu0 %v327
  %532 = vmatpush.msra.mxu0 %v323
  %533 = vmatpush.msra.mxu0 %v319
  %534 = vmatpush.msra.mxu0 %v315
  %535 = vmatpush.msra.mxu0 %v311
  %536 = vmatpush.msra.mxu0 %v307
  %537 = vmatpush.msra.mxu0 %v303
  %538 = vmatpush.msra.mxu0 %v299
  %539 = vmatpush.msra.mxu0 %v295
  %540 = vmatpush.msra.mxu0 %v291
  %541 = vmatpush.msra.mxu0 %v287
  %542 = vmatpush.msra.mxu0 %v283
  %543 = vmatmul.f32.gmra.mxu0 %v499
  %v544 = vpop.f32.mrf.mxu0
  %v545 = vadd.f32 0.0, %v544
  %546 = vdwg.mxu0
  %547 = vmatpush.msra.mxu0 %v344
  %548 = vmatpush.msra.mxu0 %v340
  %549 = vmatpush.msra.mxu0 %v336
  %550 = vmatpush.msra.mxu0 %v332
  %551 = vmatpush.msra.mxu0 %v328
  %552 = vmatpush.msra.mxu0 %v324
  %553 = vmatpush.msra.mxu0 %v320
  %554 = vmatpush.msra.mxu0 %v316
  %555 = vmatpush.msra.mxu0 %v312
  %556 = vmatpush.msra.mxu0 %v308
  %557 = vmatpush.msra.mxu0 %v304
  %558 = vmatpush.msra.mxu0 %v300
  %559 = vmatpush.msra.mxu0 %v296
  %560 = vmatpush.msra.mxu0 %v292
  %561 = vmatpush.msra.mxu0 %v288
  %562 = vmatpush.msra.mxu0 %v284
  %563 = vmatmul.f32.gmra.mxu0 %v499
  %v564 = vpop.f32.mrf.mxu0
  %v565 = vadd.f32 0.0, %v564
  %566 = vdwg.mxu0
  %567 = vmatpush.msra.mxu0 %v345
  %568 = vmatpush.msra.mxu0 %v341
  %569 = vmatpush.msra.mxu0 %v337
  %570 = vmatpush.msra.mxu0 %v333
  %571 = vmatpush.msra.mxu0 %v329
  %572 = vmatpush.msra.mxu0 %v325
  %573 = vmatpush.msra.mxu0 %v321
  %574 = vmatpush.msra.mxu0 %v317
  %575 = vmatpush.msra.mxu0 %v313
  %576 = vmatpush.msra.mxu0 %v309
  %577 = vmatpush.msra.mxu0 %v305
  %578 = vmatpush.msra.mxu0 %v301
  %579 = vmatpush.msra.mxu0 %v297
  %580 = vmatpush.msra.mxu0 %v293
  %581 = vmatpush.msra.mxu0 %v289
  %582 = vmatpush.msra.mxu0 %v285
  %583 = vmatmul.f32.gmra.mxu0 %v499
  %v584 = vpop.f32.mrf.mxu0
  %v585 = vadd.f32 0.0, %v584
  %586 = vdwg.mxu0
  %v587 = vadd.f32 %v503, %v525
  %v588 = vadd.f32 %v504, %v545
  %v589 = vadd.f32 %v505, %v565
  %v590 = vadd.f32 %v506, %v585
  %v591 = vxor.u32 %v587, 2147483648
  %v592 = vxor.u32 %v588, 2147483648
  %v593 = vxor.u32 %v589, 2147483648
  %v594 = vmul.f32 %v591, 1.442695
  %v595 = vpow.pop %v594
  %v596 = vmul.f32 %v592, 1.442695
  %v597 = vpow.pop %v596
  %v598 = vmul.f32 %v593, 1.442695
  %v599 = vpow.pop %v598
  %v600 = vadd.f32 %v595, 1.0
  %v601 = vadd.f32 %v597, 1.0
  %v602 = vadd.f32 %v599, 1.0
  %v603 = vrcp.pop %v600
  %v604 = vmul.f32 %v600, %v603
  %v605 = vsub.f32 1.0, %v604
  %v606 = vmul.f32 %v603, %v605
  %v607 = vadd.f32 %v603, %v606
  %vm608 = vweird.f32 %v600
  %vm609 = vweird.f32 %v603
  %vm610 = vmor %vm608, %vm609
  %v611 = vsel %vm610, %v603, %v607
  %v612 = vand.u32 2147483647, %v600
  %vm613 = vcmp.eq.f32.partialorder %v612, 8.507059e+37
  %v614 = vand.u32 %v600, 2147483648
  %v615 = vor.u32 1.1754944e-38, %v614
  %v616 = vsel %vm613, %v615, %v611
  %v617 = vmul.f32 1.0, %v616
  %v618 = vrcp.pop %v601
  %v619 = vmul.f32 %v601, %v618
  %v620 = vsub.f32 1.0, %v619
  %v621 = vmul.f32 %v618, %v620
  %v622 = vadd.f32 %v618, %v621
  %vm623 = vweird.f32 %v601
  %vm624 = vweird.f32 %v618
  %vm625 = vmor %vm623, %vm624
  %v626 = vsel %vm625, %v618, %v622
  %v627 = vand.u32 2147483647, %v601
  %vm628 = vcmp.eq.f32.partialorder %v627, 8.507059e+37
  %v629 = vand.u32 %v601, 2147483648
  %v630 = vor.u32 1.1754944e-38, %v629
  %v631 = vsel %vm628, %v630, %v626
  %v632 = vmul.f32 1.0, %v631
  %v633 = vrcp.pop %v602
  %v634 = vmul.f32 %v602, %v633
  %v635 = vsub.f32 1.0, %v634
  %v636 = vmul.f32 %v633, %v635
  %v637 = vadd.f32 %v633, %v636
  %vm638 = vweird.f32 %v602
  %vm639 = vweird.f32 %v633
  %vm640 = vmor %vm638, %vm639
  %v641 = vsel %vm640, %v633, %v637
  %v642 = vand.u32 2147483647, %v602
  %vm643 = vcmp.eq.f32.partialorder %v642, 8.507059e+37
  %v644 = vand.u32 %v602, 2147483648
  %v645 = vor.u32 1.1754944e-38, %v644
  %v646 = vsel %vm643, %v645, %v641
  %v647 = vmul.f32 1.0, %v646
  %v648 = vtanh.pop %v590
  %v649 = vmul.f32 %v632, %v497
  %v650 = vmul.f32 %v617, %v648
  %v651 = vadd.f32 %v649, %v650
  %v652 = vtanh.pop %v651
  %v653 = vmul.f32 %v647, %v652
  %s654 = smul.u32 2, 4
  %s655 = smul.addr %s654, 8
  %s656 = scalar_lea.vmem [#allocation2], %s655
  %v657 = vld [vmem:[%s656] sm:$0xff]
  %v658 = vld [vmem:[%s656 + $0x8] sm:$0xff]
  %v659 = vld [vmem:[%s656 + $0x10] sm:$0xff]
  %v660 = vld [vmem:[%s656 + $0x18] sm:$0xff]
  %661 = vmatpush.msra.mxu0 %v342
  %662 = vmatpush.msra.mxu0 %v338
  %663 = vmatpush.msra.mxu0 %v334
  %664 = vmatpush.msra.mxu0 %v330
  %665 = vmatpush.msra.mxu0 %v326
  %666 = vmatpush.msra.mxu0 %v322
  %667 = vmatpush.msra.mxu0 %v318
  %668 = vmatpush.msra.mxu0 %v314
  %669 = vmatpush.msra.mxu0 %v310
  %670 = vmatpush.msra.mxu0 %v306
  %671 = vmatpush.msra.mxu0 %v302
  %672 = vmatpush.msra.mxu0 %v298
  %673 = vmatpush.msra.mxu0 %v294
  %674 = vmatpush.msra.mxu0 %v290
  %675 = vmatpush.msra.mxu0 %v286
  %676 = vmatpush.msra.mxu0 %v282
  %677 = vmatmul.f32.gmra.mxu0 %v653
  %v678 = vpop.f32.mrf.mxu0
  %v679 = vadd.f32 0.0, %v678
  %680 = vdwg.mxu0
  %681 = vmatpush.msra.mxu0 %v343
  %682 = vmatpush.msra.mxu0 %v339
  %683 = vmatpush.msra.mxu0 %v335
  %684 = vmatpush.msra.mxu0 %v331
  %685 = vmatpush.msra.mxu0 %v327
  %686 = vmatpush.msra.mxu0 %v323
  %687 = vmatpush.msra.mxu0 %v319
  %688 = vmatpush.msra.mxu0 %v315
  %689 = vmatpush.msra.mxu0 %v311
  %690 = vmatpush.msra.mxu0 %v307
  %691 = vmatpush.msra.mxu0 %v303
  %692 = vmatpush.msra.mxu0 %v299
  %693 = vmatpush.msra.mxu0 %v295
  %694 = vmatpush.msra.mxu0 %v291
  %695 = vmatpush.msra.mxu0 %v287
  %696 = vmatpush.msra.mxu0 %v283
  %697 = vmatmul.f32.gmra.mxu0 %v653
  %v698 = vpop.f32.mrf.mxu0
  %v699 = vadd.f32 0.0, %v698
  %700 = vdwg.mxu0
  %701 = vmatpush.msra.mxu0 %v344
  %702 = vmatpush.msra.mxu0 %v340
  %703 = vmatpush.msra.mxu0 %v336
  %704 = vmatpush.msra.mxu0 %v332
  %705 = vmatpush.msra.mxu0 %v328
  %706 = vmatpush.msra.mxu0 %v324
  %707 = vmatpush.msra.mxu0 %v320
  %708 = vmatpush.msra.mxu0 %v316
  %709 = vmatpush.msra.mxu0 %v312
  %710 = vmatpush.msra.mxu0 %v308
  %711 = vmatpush.msra.mxu0 %v304
  %712 = vmatpush.msra.mxu0 %v300
  %713 = vmatpush.msra.mxu0 %v296
  %714 = vmatpush.msra.mxu0 %v292
  %715 = vmatpush.msra.mxu0 %v288
  %716 = vmatpush.msra.mxu0 %v284
  %717 = vmatmul.f32.gmra.mxu0 %v653
  %v718 = vpop.f32.mrf.mxu0
  %v719 = vadd.f32 0.0, %v718
  %720 = vdwg.mxu0
  %721 = vmatpush.msra.mxu0 %v345
  %722 = vmatpush.msra.mxu0 %v341
  %723 = vmatpush.msra.mxu0 %v337
  %724 = vmatpush.msra.mxu0 %v333
  %725 = vmatpush.msra.mxu0 %v329
  %726 = vmatpush.msra.mxu0 %v325
  %727 = vmatpush.msra.mxu0 %v321
  %728 = vmatpush.msra.mxu0 %v317
  %729 = vmatpush.msra.mxu0 %v313
  %730 = vmatpush.msra.mxu0 %v309
  %731 = vmatpush.msra.mxu0 %v305
  %732 = vmatpush.msra.mxu0 %v301
  %733 = vmatpush.msra.mxu0 %v297
  %734 = vmatpush.msra.mxu0 %v293
  %735 = vmatpush.msra.mxu0 %v289
  %736 = vmatpush.msra.mxu0 %v285
  %737 = vmatmul.f32.gmra.mxu0 %v653
  %v738 = vpop.f32.mrf.mxu0
  %v739 = vadd.f32 0.0, %v738
  %740 = vdwg.mxu0
  %v741 = vadd.f32 %v657, %v679
  %v742 = vadd.f32 %v658, %v699
  %v743 = vadd.f32 %v659, %v719
  %v744 = vadd.f32 %v660, %v739
  %v745 = vxor.u32 %v741, 2147483648
  %v746 = vxor.u32 %v742, 2147483648
  %v747 = vxor.u32 %v743, 2147483648
  %v748 = vmul.f32 %v745, 1.442695
  %v749 = vpow.pop %v748
  %v750 = vmul.f32 %v746, 1.442695
  %v751 = vpow.pop %v750
  %v752 = vmul.f32 %v747, 1.442695
  %v753 = vpow.pop %v752
  %v754 = vadd.f32 %v749, 1.0
  %v755 = vadd.f32 %v751, 1.0
  %v756 = vadd.f32 %v753, 1.0
  %v757 = vrcp.pop %v754
  %v758 = vmul.f32 %v754, %v757
  %v759 = vsub.f32 1.0, %v758
  %v760 = vmul.f32 %v757, %v759
  %v761 = vadd.f32 %v757, %v760
  %vm762 = vweird.f32 %v754
  %vm763 = vweird.f32 %v757
  %vm764 = vmor %vm762, %vm763
  %v765 = vsel %vm764, %v757, %v761
  %v766 = vand.u32 2147483647, %v754
  %vm767 = vcmp.eq.f32.partialorder %v766, 8.507059e+37
  %v768 = vand.u32 %v754, 2147483648
  %v769 = vor.u32 1.1754944e-38, %v768
  %v770 = vsel %vm767, %v769, %v765
  %v771 = vmul.f32 1.0, %v770
  %v772 = vrcp.pop %v755
  %v773 = vmul.f32 %v755, %v772
  %v774 = vsub.f32 1.0, %v773
  %v775 = vmul.f32 %v772, %v774
  %v776 = vadd.f32 %v772, %v775
  %vm777 = vweird.f32 %v755
  %vm778 = vweird.f32 %v772
  %vm779 = vmor %vm777, %vm778
  %v780 = vsel %vm779, %v772, %v776
  %v781 = vand.u32 2147483647, %v755
  %vm782 = vcmp.eq.f32.partialorder %v781, 8.507059e+37
  %v783 = vand.u32 %v755, 2147483648
  %v784 = vor.u32 1.1754944e-38, %v783
  %v785 = vsel %vm782, %v784, %v780
  %v786 = vmul.f32 1.0, %v785
  %v787 = vrcp.pop %v756
  %v788 = vmul.f32 %v756, %v787
  %v789 = vsub.f32 1.0, %v788
  %v790 = vmul.f32 %v787, %v789
  %v791 = vadd.f32 %v787, %v790
  %vm792 = vweird.f32 %v756
  %vm793 = vweird.f32 %v787
  %vm794 = vmor %vm792, %vm793
  %v795 = vsel %vm794, %v787, %v791
  %v796 = vand.u32 2147483647, %v756
  %vm797 = vcmp.eq.f32.partialorder %v796, 8.507059e+37
  %v798 = vand.u32 %v756, 2147483648
  %v799 = vor.u32 1.1754944e-38, %v798
  %v800 = vsel %vm797, %v799, %v795
  %v801 = vmul.f32 1.0, %v800
  %v802 = vtanh.pop %v744
  %v803 = vmul.f32 %v786, %v651
  %v804 = vmul.f32 %v771, %v802
  %v805 = vadd.f32 %v803, %v804
  %v806 = vtanh.pop %v805
  %v807 = vmul.f32 %v801, %v806
  %s808 = smul.u32 3, 4
  %s809 = smul.addr %s808, 8
  %s810 = scalar_lea.vmem [#allocation2], %s809
  %v811 = vld [vmem:[%s810] sm:$0xff]
  %v812 = vld [vmem:[%s810 + $0x8] sm:$0xff]
  %v813 = vld [vmem:[%s810 + $0x10] sm:$0xff]
  %v814 = vld [vmem:[%s810 + $0x18] sm:$0xff]
  %815 = vmatpush.msra.mxu0 %v342
  %816 = vmatpush.msra.mxu0 %v338
  %817 = vmatpush.msra.mxu0 %v334
  %818 = vmatpush.msra.mxu0 %v330
  %819 = vmatpush.msra.mxu0 %v326
  %820 = vmatpush.msra.mxu0 %v322
  %821 = vmatpush.msra.mxu0 %v318
  %822 = vmatpush.msra.mxu0 %v314
  %823 = vmatpush.msra.mxu0 %v310
  %824 = vmatpush.msra.mxu0 %v306
  %825 = vmatpush.msra.mxu0 %v302
  %826 = vmatpush.msra.mxu0 %v298
  %827 = vmatpush.msra.mxu0 %v294
  %828 = vmatpush.msra.mxu0 %v290
  %829 = vmatpush.msra.mxu0 %v286
  %830 = vmatpush.msra.mxu0 %v282
  %831 = vmatmul.f32.gmra.mxu0 %v807
  %v832 = vpop.f32.mrf.mxu0
  %v833 = vadd.f32 0.0, %v832
  %834 = vdwg.mxu0
  %835 = vmatpush.msra.mxu0 %v343
  %836 = vmatpush.msra.mxu0 %v339
  %837 = vmatpush.msra.mxu0 %v335
  %838 = vmatpush.msra.mxu0 %v331
  %839 = vmatpush.msra.mxu0 %v327
  %840 = vmatpush.msra.mxu0 %v323
  %841 = vmatpush.msra.mxu0 %v319
  %842 = vmatpush.msra.mxu0 %v315
  %843 = vmatpush.msra.mxu0 %v311
  %844 = vmatpush.msra.mxu0 %v307
  %845 = vmatpush.msra.mxu0 %v303
  %846 = vmatpush.msra.mxu0 %v299
  %847 = vmatpush.msra.mxu0 %v295
  %848 = vmatpush.msra.mxu0 %v291
  %849 = vmatpush.msra.mxu0 %v287
  %850 = vmatpush.msra.mxu0 %v283
  %851 = vmatmul.f32.gmra.mxu0 %v807
  %v852 = vpop.f32.mrf.mxu0
  %v853 = vadd.f32 0.0, %v852
  %854 = vdwg.mxu0
  %855 = vmatpush.msra.mxu0 %v344
  %856 = vmatpush.msra.mxu0 %v340
  %857 = vmatpush.msra.mxu0 %v336
  %858 = vmatpush.msra.mxu0 %v332
  %859 = vmatpush.msra.mxu0 %v328
  %860 = vmatpush.msra.mxu0 %v324
  %861 = vmatpush.msra.mxu0 %v320
  %862 = vmatpush.msra.mxu0 %v316
  %863 = vmatpush.msra.mxu0 %v312
  %864 = vmatpush.msra.mxu0 %v308
  %865 = vmatpush.msra.mxu0 %v304
  %866 = vmatpush.msra.mxu0 %v300
  %867 = vmatpush.msra.mxu0 %v296
  %868 = vmatpush.msra.mxu0 %v292
  %869 = vmatpush.msra.mxu0 %v288
  %870 = vmatpush.msra.mxu0 %v284
  %871 = vmatmul.f32.gmra.mxu0 %v807
  %v872 = vpop.f32.mrf.mxu0
  %v873 = vadd.f32 0.0, %v872
  %874 = vdwg.mxu0
  %875 = vmatpush.msra.mxu0 %v345
  %876 = vmatpush.msra.mxu0 %v341
  %877 = vmatpush.msra.mxu0 %v337
  %878 = vmatpush.msra.mxu0 %v333
  %879 = vmatpush.msra.mxu0 %v329
  %880 = vmatpush.msra.mxu0 %v325
  %881 = vmatpush.msra.mxu0 %v321
  %882 = vmatpush.msra.mxu0 %v317
  %883 = vmatpush.msra.mxu0 %v313
  %884 = vmatpush.msra.mxu0 %v309
  %885 = vmatpush.msra.mxu0 %v305
  %886 = vmatpush.msra.mxu0 %v301
  %887 = vmatpush.msra.mxu0 %v297
  %888 = vmatpush.msra.mxu0 %v293
  %889 = vmatpush.msra.mxu0 %v289
  %890 = vmatpush.msra.mxu0 %v285
  %891 = vmatmul.f32.gmra.mxu0 %v807
  %v892 = vpop.f32.mrf.mxu0
  %v893 = vadd.f32 0.0, %v892
  %894 = vdwg.mxu0
  %v895 = vadd.f32 %v811, %v833
  %v896 = vadd.f32 %v812, %v853
  %v897 = vadd.f32 %v813, %v873
  %v898 = vadd.f32 %v814, %v893
  %v899 = vxor.u32 %v895, 2147483648
  %v900 = vxor.u32 %v896, 2147483648
  %v901 = vxor.u32 %v897, 2147483648
  %v902 = vmul.f32 %v899, 1.442695
  %v903 = vpow.pop %v902
  %v904 = vmul.f32 %v900, 1.442695
  %v905 = vpow.pop %v904
  %v906 = vmul.f32 %v901, 1.442695
  %v907 = vpow.pop %v906
  %v908 = vadd.f32 %v903, 1.0
  %v909 = vadd.f32 %v905, 1.0
  %v910 = vadd.f32 %v907, 1.0
  %v911 = vrcp.pop %v908
  %v912 = vmul.f32 %v908, %v911
  %v913 = vsub.f32 1.0, %v912
  %v914 = vmul.f32 %v911, %v913
  %v915 = vadd.f32 %v911, %v914
  %vm916 = vweird.f32 %v908
  %vm917 = vweird.f32 %v911
  %vm918 = vmor %vm916, %vm917
  %v919 = vsel %vm918, %v911, %v915
  %v920 = vand.u32 2147483647, %v908
  %vm921 = vcmp.eq.f32.partialorder %v920, 8.507059e+37
  %v922 = vand.u32 %v908, 2147483648
  %v923 = vor.u32 1.1754944e-38, %v922
  %v924 = vsel %vm921, %v923, %v919
  %v925 = vmul.f32 1.0, %v924
  %v926 = vrcp.pop %v909
  %v927 = vmul.f32 %v909, %v926
  %v928 = vsub.f32 1.0, %v927
  %v929 = vmul.f32 %v926, %v928
  %v930 = vadd.f32 %v926, %v929
  %vm931 = vweird.f32 %v909
  %vm932 = vweird.f32 %v926
  %vm933 = vmor %vm931, %vm932
  %v934 = vsel %vm933, %v926, %v930
  %v935 = vand.u32 2147483647, %v909
  %vm936 = vcmp.eq.f32.partialorder %v935, 8.507059e+37
  %v937 = vand.u32 %v909, 2147483648
  %v938 = vor.u32 1.1754944e-38, %v937
  %v939 = vsel %vm936, %v938, %v934
  %v940 = vmul.f32 1.0, %v939
  %v941 = vrcp.pop %v910
  %v942 = vmul.f32 %v910, %v941
  %v943 = vsub.f32 1.0, %v942
  %v944 = vmul.f32 %v941, %v943
  %v945 = vadd.f32 %v941, %v944
  %vm946 = vweird.f32 %v910
  %vm947 = vweird.f32 %v941
  %vm948 = vmor %vm946, %vm947
  %v949 = vsel %vm948, %v941, %v945
  %v950 = vand.u32 2147483647, %v910
  %vm951 = vcmp.eq.f32.partialorder %v950, 8.507059e+37
  %v952 = vand.u32 %v910, 2147483648
  %v953 = vor.u32 1.1754944e-38, %v952
  %v954 = vsel %vm951, %v953, %v949
  %v955 = vmul.f32 1.0, %v954
  %v956 = vtanh.pop %v898
  %v957 = vmul.f32 %v940, %v805
  %v958 = vmul.f32 %v925, %v956
  %v959 = vadd.f32 %v957, %v958
  %v960 = vtanh.pop %v959
  %v961 = vmul.f32 %v955, %v960
  %s962 = smul.u32 4, 4
  %s963 = smul.addr %s962, 8
  %s964 = scalar_lea.vmem [#allocation2], %s963
  %v965 = vld [vmem:[%s964] sm:$0xff]
  %v966 = vld [vmem:[%s964 + $0x8] sm:$0xff]
  %v967 = vld [vmem:[%s964 + $0x10] sm:$0xff]
  %v968 = vld [vmem:[%s964 + $0x18] sm:$0xff]
  %969 = vmatpush.msra.mxu0 %v342
  %970 = vmatpush.msra.mxu0 %v338
  %971 = vmatpush.msra.mxu0 %v334
  %972 = vmatpush.msra.mxu0 %v330
  %973 = vmatpush.msra.mxu0 %v326
  %974 = vmatpush.msra.mxu0 %v322
  %975 = vmatpush.msra.mxu0 %v318
  %976 = vmatpush.msra.mxu0 %v314
  %977 = vmatpush.msra.mxu0 %v310
  %978 = vmatpush.msra.mxu0 %v306
  %979 = vmatpush.msra.mxu0 %v302
  %980 = vmatpush.msra.mxu0 %v298
  %981 = vmatpush.msra.mxu0 %v294
  %982 = vmatpush.msra.mxu0 %v290
  %983 = vmatpush.msra.mxu0 %v286
  %984 = vmatpush.msra.mxu0 %v282
  %985 = vmatmul.f32.gmra.mxu0 %v961
  %v986 = vpop.f32.mrf.mxu0
  %v987 = vadd.f32 0.0, %v986
  %988 = vdwg.mxu0
  %989 = vmatpush.msra.mxu0 %v343
  %990 = vmatpush.msra.mxu0 %v339
  %991 = vmatpush.msra.mxu0 %v335
  %992 = vmatpush.msra.mxu0 %v331
  %993 = vmatpush.msra.mxu0 %v327
  %994 = vmatpush.msra.mxu0 %v323
  %995 = vmatpush.msra.mxu0 %v319
  %996 = vmatpush.msra.mxu0 %v315
  %997 = vmatpush.msra.mxu0 %v311
  %998 = vmatpush.msra.mxu0 %v307
  %999 = vmatpush.msra.mxu0 %v303
  %1000 = vmatpush.msra.mxu0 %v299
  %1001 = vmatpush.msra.mxu0 %v295
  %1002 = vmatpush.msra.mxu0 %v291
  %1003 = vmatpush.msra.mxu0 %v287
  %1004 = vmatpush.msra.mxu0 %v283
  %1005 = vmatmul.f32.gmra.mxu0 %v961
  %v1006 = vpop.f32.mrf.mxu0
  %v1007 = vadd.f32 0.0, %v1006
  %1008 = vdwg.mxu0
  %1009 = vmatpush.msra.mxu0 %v344
  %1010 = vmatpush.msra.mxu0 %v340
  %1011 = vmatpush.msra.mxu0 %v336
  %1012 = vmatpush.msra.mxu0 %v332
  %1013 = vmatpush.msra.mxu0 %v328
  %1014 = vmatpush.msra.mxu0 %v324
  %1015 = vmatpush.msra.mxu0 %v320
  %1016 = vmatpush.msra.mxu0 %v316
  %1017 = vmatpush.msra.mxu0 %v312
  %1018 = vmatpush.msra.mxu0 %v308
  %1019 = vmatpush.msra.mxu0 %v304
  %1020 = vmatpush.msra.mxu0 %v300
  %1021 = vmatpush.msra.mxu0 %v296
  %1022 = vmatpush.msra.mxu0 %v292
  %1023 = vmatpush.msra.mxu0 %v288
  %1024 = vmatpush.msra.mxu0 %v284
  %1025 = vmatmul.f32.gmra.mxu0 %v961
  %v1026 = vpop.f32.mrf.mxu0
  %v1027 = vadd.f32 0.0, %v1026
  %1028 = vdwg.mxu0
  %1029 = vmatpush.msra.mxu0 %v345
  %1030 = vmatpush.msra.mxu0 %v341
  %1031 = vmatpush.msra.mxu0 %v337
  %1032 = vmatpush.msra.mxu0 %v333
  %1033 = vmatpush.msra.mxu0 %v329
  %1034 = vmatpush.msra.mxu0 %v325
  %1035 = vmatpush.msra.mxu0 %v321
  %1036 = vmatpush.msra.mxu0 %v317
  %1037 = vmatpush.msra.mxu0 %v313
  %1038 = vmatpush.msra.mxu0 %v309
  %1039 = vmatpush.msra.mxu0 %v305
  %1040 = vmatpush.msra.mxu0 %v301
  %1041 = vmatpush.msra.mxu0 %v297
  %1042 = vmatpush.msra.mxu0 %v293
  %1043 = vmatpush.msra.mxu0 %v289
  %1044 = vmatpush.msra.mxu0 %v285
  %1045 = vmatmul.f32.gmra.mxu0 %v961
  %v1046 = vpop.f32.mrf.mxu0
  %v1047 = vadd.f32 0.0, %v1046
  %1048 = vdwg.mxu0
  %v1049 = vadd.f32 %v965, %v987
  %v1050 = vadd.f32 %v966, %v1007
  %v1051 = vadd.f32 %v967, %v1027
  %v1052 = vadd.f32 %v968, %v1047
  %v1053 = vxor.u32 %v1049, 2147483648
  %v1054 = vxor.u32 %v1050, 2147483648
  %v1055 = vxor.u32 %v1051, 2147483648
  %v1056 = vmul.f32 %v1053, 1.442695
  %v1057 = vpow.pop %v1056
  %v1058 = vmul.f32 %v1054, 1.442695
  %v1059 = vpow.pop %v1058
  %v1060 = vmul.f32 %v1055, 1.442695
  %v1061 = vpow.pop %v1060
  %v1062 = vadd.f32 %v1057, 1.0
  %v1063 = vadd.f32 %v1059, 1.0
  %v1064 = vadd.f32 %v1061, 1.0
  %v1065 = vrcp.pop %v1062
  %v1066 = vmul.f32 %v1062, %v1065
  %v1067 = vsub.f32 1.0, %v1066
  %v1068 = vmul.f32 %v1065, %v1067
  %v1069 = vadd.f32 %v1065, %v1068
  %vm1070 = vweird.f32 %v1062
  %vm1071 = vweird.f32 %v1065
  %vm1072 = vmor %vm1070, %vm1071
  %v1073 = vsel %vm1072, %v1065, %v1069
  %v1074 = vand.u32 2147483647, %v1062
  %vm1075 = vcmp.eq.f32.partialorder %v1074, 8.507059e+37
  %v1076 = vand.u32 %v1062, 2147483648
  %v1077 = vor.u32 1.1754944e-38, %v1076
  %v1078 = vsel %vm1075, %v1077, %v1073
  %v1079 = vmul.f32 1.0, %v1078
  %v1080 = vrcp.pop %v1063
  %v1081 = vmul.f32 %v1063, %v1080
  %v1082 = vsub.f32 1.0, %v1081
  %v1083 = vmul.f32 %v1080, %v1082
  %v1084 = vadd.f32 %v1080, %v1083
  %vm1085 = vweird.f32 %v1063
  %vm1086 = vweird.f32 %v1080
  %vm1087 = vmor %vm1085, %vm1086
  %v1088 = vsel %vm1087, %v1080, %v1084
  %v1089 = vand.u32 2147483647, %v1063
  %vm1090 = vcmp.eq.f32.partialorder %v1089, 8.507059e+37
  %v1091 = vand.u32 %v1063, 2147483648
  %v1092 = vor.u32 1.1754944e-38, %v1091
  %v1093 = vsel %vm1090, %v1092, %v1088
  %v1094 = vmul.f32 1.0, %v1093
  %v1095 = vrcp.pop %v1064
  %v1096 = vmul.f32 %v1064, %v1095
  %v1097 = vsub.f32 1.0, %v1096
  %v1098 = vmul.f32 %v1095, %v1097
  %v1099 = vadd.f32 %v1095, %v1098
  %vm1100 = vweird.f32 %v1064
  %vm1101 = vweird.f32 %v1095
  %vm1102 = vmor %vm1100, %vm1101
  %v1103 = vsel %vm1102, %v1095, %v1099
  %v1104 = vand.u32 2147483647, %v1064
  %vm1105 = vcmp.eq.f32.partialorder %v1104, 8.507059e+37
  %v1106 = vand.u32 %v1064, 2147483648
  %v1107 = vor.u32 1.1754944e-38, %v1106
  %v1108 = vsel %vm1105, %v1107, %v1103
  %v1109 = vmul.f32 1.0, %v1108
  %v1110 = vtanh.pop %v1052
  %v1111 = vmul.f32 %v1094, %v959
  %v1112 = vmul.f32 %v1079, %v1110
  %v1113 = vadd.f32 %v1111, %v1112
  %v1114 = vtanh.pop %v1113
  %v1115 = vmul.f32 %v1109, %v1114
  %s1116 = smul.u32 5, 4
  %s1117 = smul.addr %s1116, 8
  %s1118 = scalar_lea.vmem [#allocation2], %s1117
  %v1119 = vld [vmem:[%s1118] sm:$0xff]
  %v1120 = vld [vmem:[%s1118 + $0x8] sm:$0xff]
  %v1121 = vld [vmem:[%s1118 + $0x10] sm:$0xff]
  %v1122 = vld [vmem:[%s1118 + $0x18] sm:$0xff]
  %1123 = vmatpush.msra.mxu0 %v342
  %1124 = vmatpush.msra.mxu0 %v338
  %1125 = vmatpush.msra.mxu0 %v334
  %1126 = vmatpush.msra.mxu0 %v330
  %1127 = vmatpush.msra.mxu0 %v326
  %1128 = vmatpush.msra.mxu0 %v322
  %1129 = vmatpush.msra.mxu0 %v318
  %1130 = vmatpush.msra.mxu0 %v314
  %1131 = vmatpush.msra.mxu0 %v310
  %1132 = vmatpush.msra.mxu0 %v306
  %1133 = vmatpush.msra.mxu0 %v302
  %1134 = vmatpush.msra.mxu0 %v298
  %1135 = vmatpush.msra.mxu0 %v294
  %1136 = vmatpush.msra.mxu0 %v290
  %1137 = vmatpush.msra.mxu0 %v286
  %1138 = vmatpush.msra.mxu0 %v282
  %1139 = vmatmul.f32.gmra.mxu0 %v1115
  %v1140 = vpop.f32.mrf.mxu0
  %v1141 = vadd.f32 0.0, %v1140
  %1142 = vdwg.mxu0
  %1143 = vmatpush.msra.mxu0 %v343
  %1144 = vmatpush.msra.mxu0 %v339
  %1145 = vmatpush.msra.mxu0 %v335
  %1146 = vmatpush.msra.mxu0 %v331
  %1147 = vmatpush.msra.mxu0 %v327
  %1148 = vmatpush.msra.mxu0 %v323
  %1149 = vmatpush.msra.mxu0 %v319
  %1150 = vmatpush.msra.mxu0 %v315
  %1151 = vmatpush.msra.mxu0 %v311
  %1152 = vmatpush.msra.mxu0 %v307
  %1153 = vmatpush.msra.mxu0 %v303
  %1154 = vmatpush.msra.mxu0 %v299
  %1155 = vmatpush.msra.mxu0 %v295
  %1156 = vmatpush.msra.mxu0 %v291
  %1157 = vmatpush.msra.mxu0 %v287
  %1158 = vmatpush.msra.mxu0 %v283
  %1159 = vmatmul.f32.gmra.mxu0 %v1115
  %v1160 = vpop.f32.mrf.mxu0
  %v1161 = vadd.f32 0.0, %v1160
  %1162 = vdwg.mxu0
  %1163 = vmatpush.msra.mxu0 %v344
  %1164 = vmatpush.msra.mxu0 %v340
  %1165 = vmatpush.msra.mxu0 %v336
  %1166 = vmatpush.msra.mxu0 %v332
  %1167 = vmatpush.msra.mxu0 %v328
  %1168 = vmatpush.msra.mxu0 %v324
  %1169 = vmatpush.msra.mxu0 %v320
  %1170 = vmatpush.msra.mxu0 %v316
  %1171 = vmatpush.msra.mxu0 %v312
  %1172 = vmatpush.msra.mxu0 %v308
  %1173 = vmatpush.msra.mxu0 %v304
  %1174 = vmatpush.msra.mxu0 %v300
  %1175 = vmatpush.msra.mxu0 %v296
  %1176 = vmatpush.msra.mxu0 %v292
  %1177 = vmatpush.msra.mxu0 %v288
  %1178 = vmatpush.msra.mxu0 %v284
  %1179 = vmatmul.f32.gmra.mxu0 %v1115
  %v1180 = vpop.f32.mrf.mxu0
  %v1181 = vadd.f32 0.0, %v1180
  %1182 = vdwg.mxu0
  %1183 = vmatpush.msra.mxu0 %v345
  %1184 = vmatpush.msra.mxu0 %v341
  %1185 = vmatpush.msra.mxu0 %v337
  %1186 = vmatpush.msra.mxu0 %v333
  %1187 = vmatpush.msra.mxu0 %v329
  %1188 = vmatpush.msra.mxu0 %v325
  %1189 = vmatpush.msra.mxu0 %v321
  %1190 = vmatpush.msra.mxu0 %v317
  %1191 = vmatpush.msra.mxu0 %v313
  %1192 = vmatpush.msra.mxu0 %v309
  %1193 = vmatpush.msra.mxu0 %v305
  %1194 = vmatpush.msra.mxu0 %v301
  %1195 = vmatpush.msra.mxu0 %v297
  %1196 = vmatpush.msra.mxu0 %v293
  %1197 = vmatpush.msra.mxu0 %v289
  %1198 = vmatpush.msra.mxu0 %v285
  %1199 = vmatmul.f32.gmra.mxu0 %v1115
  %v1200 = vpop.f32.mrf.mxu0
  %v1201 = vadd.f32 0.0, %v1200
  %1202 = vdwg.mxu0
  %v1203 = vadd.f32 %v1119, %v1141
  %v1204 = vadd.f32 %v1120, %v1161
  %v1205 = vadd.f32 %v1121, %v1181
  %v1206 = vadd.f32 %v1122, %v1201
  %v1207 = vxor.u32 %v1203, 2147483648
  %v1208 = vxor.u32 %v1204, 2147483648
  %v1209 = vxor.u32 %v1205, 2147483648
  %v1210 = vmul.f32 %v1207, 1.442695
  %v1211 = vpow.pop %v1210
  %v1212 = vmul.f32 %v1208, 1.442695
  %v1213 = vpow.pop %v1212
  %v1214 = vmul.f32 %v1209, 1.442695
  %v1215 = vpow.pop %v1214
  %v1216 = vadd.f32 %v1211, 1.0
  %v1217 = vadd.f32 %v1213, 1.0
  %v1218 = vadd.f32 %v1215, 1.0
  %v1219 = vrcp.pop %v1216
  %v1220 = vmul.f32 %v1216, %v1219
  %v1221 = vsub.f32 1.0, %v1220
  %v1222 = vmul.f32 %v1219, %v1221
  %v1223 = vadd.f32 %v1219, %v1222
  %vm1224 = vweird.f32 %v1216
  %vm1225 = vweird.f32 %v1219
  %vm1226 = vmor %vm1224, %vm1225
  %v1227 = vsel %vm1226, %v1219, %v1223
  %v1228 = vand.u32 2147483647, %v1216
  %vm1229 = vcmp.eq.f32.partialorder %v1228, 8.507059e+37
  %v1230 = vand.u32 %v1216, 2147483648
  %v1231 = vor.u32 1.1754944e-38, %v1230
  %v1232 = vsel %vm1229, %v1231, %v1227
  %v1233 = vmul.f32 1.0, %v1232
  %v1234 = vrcp.pop %v1217
  %v1235 = vmul.f32 %v1217, %v1234
  %v1236 = vsub.f32 1.0, %v1235
  %v1237 = vmul.f32 %v1234, %v1236
  %v1238 = vadd.f32 %v1234, %v1237
  %vm1239 = vweird.f32 %v1217
  %vm1240 = vweird.f32 %v1234
  %vm1241 = vmor %vm1239, %vm1240
  %v1242 = vsel %vm1241, %v1234, %v1238
  %v1243 = vand.u32 2147483647, %v1217
  %vm1244 = vcmp.eq.f32.partialorder %v1243, 8.507059e+37
  %v1245 = vand.u32 %v1217, 2147483648
  %v1246 = vor.u32 1.1754944e-38, %v1245
  %v1247 = vsel %vm1244, %v1246, %v1242
  %v1248 = vmul.f32 1.0, %v1247
  %v1249 = vrcp.pop %v1218
  %v1250 = vmul.f32 %v1218, %v1249
  %v1251 = vsub.f32 1.0, %v1250
  %v1252 = vmul.f32 %v1249, %v1251
  %v1253 = vadd.f32 %v1249, %v1252
  %vm1254 = vweird.f32 %v1218
  %vm1255 = vweird.f32 %v1249
  %vm1256 = vmor %vm1254, %vm1255
  %v1257 = vsel %vm1256, %v1249, %v1253
  %v1258 = vand.u32 2147483647, %v1218
  %vm1259 = vcmp.eq.f32.partialorder %v1258, 8.507059e+37
  %v1260 = vand.u32 %v1218, 2147483648
  %v1261 = vor.u32 1.1754944e-38, %v1260
  %v1262 = vsel %vm1259, %v1261, %v1257
  %v1263 = vmul.f32 1.0, %v1262
  %v1264 = vtanh.pop %v1206
  %v1265 = vmul.f32 %v1248, %v1113
  %v1266 = vmul.f32 %v1233, %v1264
  %v1267 = vadd.f32 %v1265, %v1266
  %v1268 = vtanh.pop %v1267
  %v1269 = vmul.f32 %v1263, %v1268
  %s1270 = smul.u32 6, 4
  %s1271 = smul.addr %s1270, 8
  %s1272 = scalar_lea.vmem [#allocation2], %s1271
  %v1273 = vld [vmem:[%s1272] sm:$0xff]
  %v1274 = vld [vmem:[%s1272 + $0x8] sm:$0xff]
  %v1275 = vld [vmem:[%s1272 + $0x10] sm:$0xff]
  %v1276 = vld [vmem:[%s1272 + $0x18] sm:$0xff]
  %1277 = vmatpush.msra.mxu0 %v342
  %1278 = vmatpush.msra.mxu0 %v338
  %1279 = vmatpush.msra.mxu0 %v334
  %1280 = vmatpush.msra.mxu0 %v330
  %1281 = vmatpush.msra.mxu0 %v326
  %1282 = vmatpush.msra.mxu0 %v322
  %1283 = vmatpush.msra.mxu0 %v318
  %1284 = vmatpush.msra.mxu0 %v314
  %1285 = vmatpush.msra.mxu0 %v310
  %1286 = vmatpush.msra.mxu0 %v306
  %1287 = vmatpush.msra.mxu0 %v302
  %1288 = vmatpush.msra.mxu0 %v298
  %1289 = vmatpush.msra.mxu0 %v294
  %1290 = vmatpush.msra.mxu0 %v290
  %1291 = vmatpush.msra.mxu0 %v286
  %1292 = vmatpush.msra.mxu0 %v282
  %1293 = vmatmul.f32.gmra.mxu0 %v1269
  %v1294 = vpop.f32.mrf.mxu0
  %v1295 = vadd.f32 0.0, %v1294
  %1296 = vdwg.mxu0
  %1297 = vmatpush.msra.mxu0 %v343
  %1298 = vmatpush.msra.mxu0 %v339
  %1299 = vmatpush.msra.mxu0 %v335
  %1300 = vmatpush.msra.mxu0 %v331
  %1301 = vmatpush.msra.mxu0 %v327
  %1302 = vmatpush.msra.mxu0 %v323
  %1303 = vmatpush.msra.mxu0 %v319
  %1304 = vmatpush.msra.mxu0 %v315
  %1305 = vmatpush.msra.mxu0 %v311
  %1306 = vmatpush.msra.mxu0 %v307
  %1307 = vmatpush.msra.mxu0 %v303
  %1308 = vmatpush.msra.mxu0 %v299
  %1309 = vmatpush.msra.mxu0 %v295
  %1310 = vmatpush.msra.mxu0 %v291
  %1311 = vmatpush.msra.mxu0 %v287
  %1312 = vmatpush.msra.mxu0 %v283
  %1313 = vmatmul.f32.gmra.mxu0 %v1269
  %v1314 = vpop.f32.mrf.mxu0
  %v1315 = vadd.f32 0.0, %v1314
  %1316 = vdwg.mxu0
  %1317 = vmatpush.msra.mxu0 %v344
  %1318 = vmatpush.msra.mxu0 %v340
  %1319 = vmatpush.msra.mxu0 %v336
  %1320 = vmatpush.msra.mxu0 %v332
  %1321 = vmatpush.msra.mxu0 %v328
  %1322 = vmatpush.msra.mxu0 %v324
  %1323 = vmatpush.msra.mxu0 %v320
  %1324 = vmatpush.msra.mxu0 %v316
  %1325 = vmatpush.msra.mxu0 %v312
  %1326 = vmatpush.msra.mxu0 %v308
  %1327 = vmatpush.msra.mxu0 %v304
  %1328 = vmatpush.msra.mxu0 %v300
  %1329 = vmatpush.msra.mxu0 %v296
  %1330 = vmatpush.msra.mxu0 %v292
  %1331 = vmatpush.msra.mxu0 %v288
  %1332 = vmatpush.msra.mxu0 %v284
  %1333 = vmatmul.f32.gmra.mxu0 %v1269
  %v1334 = vpop.f32.mrf.mxu0
  %v1335 = vadd.f32 0.0, %v1334
  %1336 = vdwg.mxu0
  %1337 = vmatpush.msra.mxu0 %v345
  %1338 = vmatpush.msra.mxu0 %v341
  %1339 = vmatpush.msra.mxu0 %v337
  %1340 = vmatpush.msra.mxu0 %v333
  %1341 = vmatpush.msra.mxu0 %v329
  %1342 = vmatpush.msra.mxu0 %v325
  %1343 = vmatpush.msra.mxu0 %v321
  %1344 = vmatpush.msra.mxu0 %v317
  %1345 = vmatpush.msra.mxu0 %v313
  %1346 = vmatpush.msra.mxu0 %v309
  %1347 = vmatpush.msra.mxu0 %v305
  %1348 = vmatpush.msra.mxu0 %v301
  %1349 = vmatpush.msra.mxu0 %v297
  %1350 = vmatpush.msra.mxu0 %v293
  %1351 = vmatpush.msra.mxu0 %v289
  %1352 = vmatpush.msra.mxu0 %v285
  %1353 = vmatmul.f32.gmra.mxu0 %v1269
  %v1354 = vpop.f32.mrf.mxu0
  %v1355 = vadd.f32 0.0, %v1354
  %1356 = vdwg.mxu0
  %v1357 = vadd.f32 %v1273, %v1295
  %v1358 = vadd.f32 %v1274, %v1315
  %v1359 = vadd.f32 %v1275, %v1335
  %v1360 = vadd.f32 %v1276, %v1355
  %v1361 = vxor.u32 %v1357, 2147483648
  %v1362 = vxor.u32 %v1358, 2147483648
  %v1363 = vxor.u32 %v1359, 2147483648
  %v1364 = vmul.f32 %v1361, 1.442695
  %v1365 = vpow.pop %v1364
  %v1366 = vmul.f32 %v1362, 1.442695
  %v1367 = vpow.pop %v1366
  %v1368 = vmul.f32 %v1363, 1.442695
  %v1369 = vpow.pop %v1368
  %v1370 = vadd.f32 %v1365, 1.0
  %v1371 = vadd.f32 %v1367, 1.0
  %v1372 = vadd.f32 %v1369, 1.0
  %v1373 = vrcp.pop %v1370
  %v1374 = vmul.f32 %v1370, %v1373
  %v1375 = vsub.f32 1.0, %v1374
  %v1376 = vmul.f32 %v1373, %v1375
  %v1377 = vadd.f32 %v1373, %v1376
  %vm1378 = vweird.f32 %v1370
  %vm1379 = vweird.f32 %v1373
  %vm1380 = vmor %vm1378, %vm1379
  %v1381 = vsel %vm1380, %v1373, %v1377
  %v1382 = vand.u32 2147483647, %v1370
  %vm1383 = vcmp.eq.f32.partialorder %v1382, 8.507059e+37
  %v1384 = vand.u32 %v1370, 2147483648
  %v1385 = vor.u32 1.1754944e-38, %v1384
  %v1386 = vsel %vm1383, %v1385, %v1381
  %v1387 = vmul.f32 1.0, %v1386
  %v1388 = vrcp.pop %v1371
  %v1389 = vmul.f32 %v1371, %v1388
  %v1390 = vsub.f32 1.0, %v1389
  %v1391 = vmul.f32 %v1388, %v1390
  %v1392 = vadd.f32 %v1388, %v1391
  %vm1393 = vweird.f32 %v1371
  %vm1394 = vweird.f32 %v1388
  %vm1395 = vmor %vm1393, %vm1394
  %v1396 = vsel %vm1395, %v1388, %v1392
  %v1397 = vand.u32 2147483647, %v1371
  %vm1398 = vcmp.eq.f32.partialorder %v1397, 8.507059e+37
  %v1399 = vand.u32 %v1371, 2147483648
  %v1400 = vor.u32 1.1754944e-38, %v1399
  %v1401 = vsel %vm1398, %v1400, %v1396
  %v1402 = vmul.f32 1.0, %v1401
  %v1403 = vrcp.pop %v1372
  %v1404 = vmul.f32 %v1372, %v1403
  %v1405 = vsub.f32 1.0, %v1404
  %v1406 = vmul.f32 %v1403, %v1405
  %v1407 = vadd.f32 %v1403, %v1406
  %vm1408 = vweird.f32 %v1372
  %vm1409 = vweird.f32 %v1403
  %vm1410 = vmor %vm1408, %vm1409
  %v1411 = vsel %vm1410, %v1403, %v1407
  %v1412 = vand.u32 2147483647, %v1372
  %vm1413 = vcmp.eq.f32.partialorder %v1412, 8.507059e+37
  %v1414 = vand.u32 %v1372, 2147483648
  %v1415 = vor.u32 1.1754944e-38, %v1414
  %v1416 = vsel %vm1413, %v1415, %v1411
  %v1417 = vmul.f32 1.0, %v1416
  %v1418 = vtanh.pop %v1360
  %v1419 = vmul.f32 %v1402, %v1267
  %v1420 = vmul.f32 %v1387, %v1418
  %v1421 = vadd.f32 %v1419, %v1420
  %v1422 = vtanh.pop %v1421
  %v1423 = vmul.f32 %v1417, %v1422
  %s1424 = smul.u32 7, 4
  %s1425 = smul.addr %s1424, 8
  %s1426 = scalar_lea.vmem [#allocation2], %s1425
  %v1427 = vld [vmem:[%s1426] sm:$0xff]
  %v1428 = vld [vmem:[%s1426 + $0x8] sm:$0xff]
  %v1429 = vld [vmem:[%s1426 + $0x10] sm:$0xff]
  %v1430 = vld [vmem:[%s1426 + $0x18] sm:$0xff]
  %1431 = vmatpush.msra.mxu0 %v342
  %1432 = vmatpush.msra.mxu0 %v338
  %1433 = vmatpush.msra.mxu0 %v334
  %1434 = vmatpush.msra.mxu0 %v330
  %1435 = vmatpush.msra.mxu0 %v326
  %1436 = vmatpush.msra.mxu0 %v322
  %1437 = vmatpush.msra.mxu0 %v318
  %1438 = vmatpush.msra.mxu0 %v314
  %1439 = vmatpush.msra.mxu0 %v310
  %1440 = vmatpush.msra.mxu0 %v306
  %1441 = vmatpush.msra.mxu0 %v302
  %1442 = vmatpush.msra.mxu0 %v298
  %1443 = vmatpush.msra.mxu0 %v294
  %1444 = vmatpush.msra.mxu0 %v290
  %1445 = vmatpush.msra.mxu0 %v286
  %1446 = vmatpush.msra.mxu0 %v282
  %1447 = vmatmul.f32.gmra.mxu0 %v1423
  %v1448 = vpop.f32.mrf.mxu0
  %v1449 = vadd.f32 0.0, %v1448
  %1450 = vdwg.mxu0
  %1451 = vmatpush.msra.mxu0 %v343
  %1452 = vmatpush.msra.mxu0 %v339
  %1453 = vmatpush.msra.mxu0 %v335
  %1454 = vmatpush.msra.mxu0 %v331
  %1455 = vmatpush.msra.mxu0 %v327
  %1456 = vmatpush.msra.mxu0 %v323
  %1457 = vmatpush.msra.mxu0 %v319
  %1458 = vmatpush.msra.mxu0 %v315
  %1459 = vmatpush.msra.mxu0 %v311
  %1460 = vmatpush.msra.mxu0 %v307
  %1461 = vmatpush.msra.mxu0 %v303
  %1462 = vmatpush.msra.mxu0 %v299
  %1463 = vmatpush.msra.mxu0 %v295
  %1464 = vmatpush.msra.mxu0 %v291
  %1465 = vmatpush.msra.mxu0 %v287
  %1466 = vmatpush.msra.mxu0 %v283
  %1467 = vmatmul.f32.gmra.mxu0 %v1423
  %v1468 = vpop.f32.mrf.mxu0
  %v1469 = vadd.f32 0.0, %v1468
  %1470 = vdwg.mxu0
  %1471 = vmatpush.msra.mxu0 %v344
  %1472 = vmatpush.msra.mxu0 %v340
  %1473 = vmatpush.msra.mxu0 %v336
  %1474 = vmatpush.msra.mxu0 %v332
  %1475 = vmatpush.msra.mxu0 %v328
  %1476 = vmatpush.msra.mxu0 %v324
  %1477 = vmatpush.msra.mxu0 %v320
  %1478 = vmatpush.msra.mxu0 %v316
  %1479 = vmatpush.msra.mxu0 %v312
  %1480 = vmatpush.msra.mxu0 %v308
  %1481 = vmatpush.msra.mxu0 %v304
  %1482 = vmatpush.msra.mxu0 %v300
  %1483 = vmatpush.msra.mxu0 %v296
  %1484 = vmatpush.msra.mxu0 %v292
  %1485 = vmatpush.msra.mxu0 %v288
  %1486 = vmatpush.msra.mxu0 %v284
  %1487 = vmatmul.f32.gmra.mxu0 %v1423
  %v1488 = vpop.f32.mrf.mxu0
  %v1489 = vadd.f32 0.0, %v1488
  %1490 = vdwg.mxu0
  %1491 = vmatpush.msra.mxu0 %v345
  %1492 = vmatpush.msra.mxu0 %v341
  %1493 = vmatpush.msra.mxu0 %v337
  %1494 = vmatpush.msra.mxu0 %v333
  %1495 = vmatpush.msra.mxu0 %v329
  %1496 = vmatpush.msra.mxu0 %v325
  %1497 = vmatpush.msra.mxu0 %v321
  %1498 = vmatpush.msra.mxu0 %v317
  %1499 = vmatpush.msra.mxu0 %v313
  %1500 = vmatpush.msra.mxu0 %v309
  %1501 = vmatpush.msra.mxu0 %v305
  %1502 = vmatpush.msra.mxu0 %v301
  %1503 = vmatpush.msra.mxu0 %v297
  %1504 = vmatpush.msra.mxu0 %v293
  %1505 = vmatpush.msra.mxu0 %v289
  %1506 = vmatpush.msra.mxu0 %v285
  %1507 = vmatmul.f32.gmra.mxu0 %v1423
  %v1508 = vpop.f32.mrf.mxu0
  %v1509 = vadd.f32 0.0, %v1508
  %1510 = vdwg.mxu0
  %v1511 = vadd.f32 %v1427, %v1449
  %v1512 = vadd.f32 %v1428, %v1469
  %v1513 = vadd.f32 %v1429, %v1489
  %v1514 = vadd.f32 %v1430, %v1509
  %v1515 = vxor.u32 %v1511, 2147483648
  %v1516 = vxor.u32 %v1512, 2147483648
  %v1517 = vxor.u32 %v1513, 2147483648
  %v1518 = vmul.f32 %v1515, 1.442695
  %v1519 = vpow.pop %v1518
  %v1520 = vmul.f32 %v1516, 1.442695
  %v1521 = vpow.pop %v1520
  %v1522 = vmul.f32 %v1517, 1.442695
  %v1523 = vpow.pop %v1522
  %v1524 = vadd.f32 %v1519, 1.0
  %v1525 = vadd.f32 %v1521, 1.0
  %v1526 = vadd.f32 %v1523, 1.0
  %v1527 = vrcp.pop %v1524
  %v1528 = vmul.f32 %v1524, %v1527
  %v1529 = vsub.f32 1.0, %v1528
  %v1530 = vmul.f32 %v1527, %v1529
  %v1531 = vadd.f32 %v1527, %v1530
  %vm1532 = vweird.f32 %v1524
  %vm1533 = vweird.f32 %v1527
  %vm1534 = vmor %vm1532, %vm1533
  %v1535 = vsel %vm1534, %v1527, %v1531
  %v1536 = vand.u32 2147483647, %v1524
  %vm1537 = vcmp.eq.f32.partialorder %v1536, 8.507059e+37
  %v1538 = vand.u32 %v1524, 2147483648
  %v1539 = vor.u32 1.1754944e-38, %v1538
  %v1540 = vsel %vm1537, %v1539, %v1535
  %v1541 = vmul.f32 1.0, %v1540
  %v1542 = vrcp.pop %v1525
  %v1543 = vmul.f32 %v1525, %v1542
  %v1544 = vsub.f32 1.0, %v1543
  %v1545 = vmul.f32 %v1542, %v1544
  %v1546 = vadd.f32 %v1542, %v1545
  %vm1547 = vweird.f32 %v1525
  %vm1548 = vweird.f32 %v1542
  %vm1549 = vmor %vm1547, %vm1548
  %v1550 = vsel %vm1549, %v1542, %v1546
  %v1551 = vand.u32 2147483647, %v1525
  %vm1552 = vcmp.eq.f32.partialorder %v1551, 8.507059e+37
  %v1553 = vand.u32 %v1525, 2147483648
  %v1554 = vor.u32 1.1754944e-38, %v1553
  %v1555 = vsel %vm1552, %v1554, %v1550
  %v1556 = vmul.f32 1.0, %v1555
  %v1557 = vrcp.pop %v1526
  %v1558 = vmul.f32 %v1526, %v1557
  %v1559 = vsub.f32 1.0, %v1558
  %v1560 = vmul.f32 %v1557, %v1559
  %v1561 = vadd.f32 %v1557, %v1560
  %vm1562 = vweird.f32 %v1526
  %vm1563 = vweird.f32 %v1557
  %vm1564 = vmor %vm1562, %vm1563
  %v1565 = vsel %vm1564, %v1557, %v1561
  %v1566 = vand.u32 2147483647, %v1526
  %vm1567 = vcmp.eq.f32.partialorder %v1566, 8.507059e+37
  %v1568 = vand.u32 %v1526, 2147483648
  %v1569 = vor.u32 1.1754944e-38, %v1568
  %v1570 = vsel %vm1567, %v1569, %v1565
  %v1571 = vmul.f32 1.0, %v1570
  %v1572 = vtanh.pop %v1514
  %v1573 = vmul.f32 %v1556, %v1421
  %v1574 = vmul.f32 %v1541, %v1572
  %v1575 = vadd.f32 %v1573, %v1574
  %v1576 = vtanh.pop %v1575
  %v1577 = vmul.f32 %v1571, %v1576
  %v1578 = vmax.f32 %v1577, 0.0
  %v1579 = vld [vmem:[%s4] sm:$0xff]
  %v1580 = vld [vmem:[%s4 + $0x8] sm:$0xff]
  %v1581 = vld [vmem:[%s4 + $0x10] sm:$0xff]
  %v1582 = vld [vmem:[%s4 + $0x18] sm:$0xff]
  %v1583 = vld [vmem:[%s4 + $0x20] sm:$0xff]
  %v1584 = vld [vmem:[%s4 + $0x28] sm:$0xff]
  %v1585 = vld [vmem:[%s4 + $0x30] sm:$0xff]
  %v1586 = vld [vmem:[%s4 + $0x38] sm:$0xff]
  %v1587 = vld [vmem:[%s4 + $0x40] sm:$0xff]
  %v1588 = vld [vmem:[%s4 + $0x48] sm:$0xff]
  %v1589 = vld [vmem:[%s4 + $0x50] sm:$0xff]
  %v1590 = vld [vmem:[%s4 + $0x58] sm:$0xff]
  %v1591 = vld [vmem:[%s4 + $0x60] sm:$0xff]
  %v1592 = vld [vmem:[%s4 + $0x68] sm:$0xff]
  %v1593 = vld [vmem:[%s4 + $0x70] sm:$0xff]
  %v1594 = vld [vmem:[%s4 + $0x78] sm:$0xff]
  %v1595 = vld [vmem:[%s5] sm:$0x1]
  %v1597 = vperm.slane %v1595, 0
  %1599 = vmatpush.msra.mxu0 %v1594
  %1600 = vmatpush.msra.mxu0 %v1593
  %1601 = vmatpush.msra.mxu0 %v1592
  %1602 = vmatpush.msra.mxu0 %v1591
  %1603 = vmatpush.msra.mxu0 %v1590
  %1604 = vmatpush.msra.mxu0 %v1589
  %1605 = vmatpush.msra.mxu0 %v1588
  %1606 = vmatpush.msra.mxu0 %v1587
  %1607 = vmatpush.msra.mxu0 %v1586
  %1608 = vmatpush.msra.mxu0 %v1585
  %1609 = vmatpush.msra.mxu0 %v1584
  %1610 = vmatpush.msra.mxu0 %v1583
  %1611 = vmatpush.msra.mxu0 %v1582
  %1612 = vmatpush.msra.mxu0 %v1581
  %1613 = vmatpush.msra.mxu0 %v1580
  %1614 = vmatpush.msra.mxu0 %v1579
  %1615 = vmatmul.f32.gmra.mxu0 %v1578
  %v1616 = vpop.f32.mrf.mxu0
  %v1617 = vadd.f32 %v1597, %v1616
  %1618 = vdwg.mxu0
  %1619 = vst [vmem:[%s6] sm:$0xff] %v1617
  // Predicated region
  $region26: #{lstm_forward.1} parent=0 // pred_check
    _
  $region27: #{lstm_forward.1} parent=0 // pred_check_branch
    %1621 = sbr.rel (0) target = $region29
  $region28: #{lstm_forward.1} parent=0 // pred_region
    _
  $region29: #{lstm_forward.1} parent=0 // pred_fallthru
    _
  // Predicated region
  $region30: #{lstm_forward.1} parent=0 // pred_check
    _
  $region31: #{lstm_forward.1} parent=0 // pred_check_branch
    %1623 = sbr.rel (0) target = $region33
  $region32: #{lstm_forward.1} parent=0 // pred_region
    _
  $region33: #{lstm_forward.1} parent=0 // pred_fallthru
    _

</llo_original>
